<compile_context>
chip_gen: v6e
topology: v6e:2x2x1
jax: 0.10.0
libtpu: 0.0.40
codegen_flags: <defaults>
</compile_context>

<pallas_src>
import functools

import jax
import jax.numpy as jnp
from jax.experimental import pallas as pl
from jax.experimental.pallas import tpu as pltpu

EPS = 1e-5


def _round_up(x, m):
    return (x + m - 1) // m * m


# ----------------------------- in-kernel helpers ----------------------------

def _bn_rows(y, *, relu):
    """BatchNorm1d training-mode batch stats (biased var, eps=1e-5, affine=False).

    y: (R, C) f32 value.  Computed entirely on the vreg-resident value — no VMEM
    read-modify-write of the activation (single downstream store).
    """
    mu = jnp.mean(y, axis=0, keepdims=True)
    var = jnp.mean(jnp.square(y - mu), axis=0, keepdims=True)   # biased variance
    yn = (y - mu) * jax.lax.rsqrt(var + EPS)
    return jnp.maximum(yn, 0.0) if relu else yn


def _conv_bn_relu(in_ref, w_ref, *, n, l_in, l_in_pad, l_out, k_sz, c_in, stride):
    """Conv1d (bias dropped; cancelled by the affine-free BN) -> BN(train) -> ReLU.

    in_ref : (n*l_in_pad, c_in) VMEM scratch, NLC layout, batch b's rows start at b*l_in_pad
             (multiple of 8 sublanes).
    w_ref  : (k_sz*c_in, c_out) fused weight, tap-major — matches the tap concat below.

    The conv is ONE MXU matmul: an in-VMEM im2col builds the (n*l_out, k_sz*c_in) tap block
    as a value (strided sublane reads straight from the resident scratch), then a single dot.
    Returns the (n*l_out, c_out) normalized/ReLU'd value (caller does the single store).
    """
    assert w_ref.shape == (k_sz * c_in, w_ref.shape[1])
    # Tap-read invariant: all reads stay inside each batch's padded block.
    assert stride * (l_out - 1) + (k_sz - 1) <= l_in - 1 <= l_in_pad - 1

    rows = []
    for b in range(n):                   # TODO(synk): lax.fori_loop / grid axis once N grows.
        base = b * l_in_pad              # compile-time constant, multiple of 8.
        taps = []
        for k in range(k_sz):            # short K loop stays unrolled.
            if stride == 1:
                taps.append(in_ref[pl.ds(base + k, l_out), :])
            else:
                taps.append(in_ref[pl.ds(base + k, l_out, stride=stride), :])
        rows.append(jnp.concatenate(taps, axis=1))            # (l_out, k_sz*c_in)
    tap_blk = jnp.concatenate(rows, axis=0)                    # (n*l_out, k_sz*c_in)

    y = jnp.dot(tap_blk, w_ref[...], preferred_element_type=jnp.float32)
    return _bn_rows(y, relu=True)                              # (n*l_out, c_out)


def _fused_kernel(x_ref, w1_ref, w2_ref, w3_ref, o_ref, a0_ref, a1_ref, a2_ref,
                  *, n, strides, kernel_sizes, lens, lens_pad, chans):
    l0, l1, l2, l3 = lens
    p0, p1, p2 = lens_pad
    c0, c1, c2, c3 = chans

    # ---- entry: NCL -> NLC transpose on the VMEM-resident tile + norm0 (BN, no ReLU) ----
    xt = jnp.concatenate([jnp.transpose(x_ref[b], (1, 0)) for b in range(n)],
                         axis=0)                               # (n*l0, c0)
    x0 = _bn_rows(xt, relu=False)
    for b in range(n):
        a0_ref[pl.ds(b * p0, l0), :] = x0[b * l0:(b + 1) * l0, :]

    # ---- block 1: conv1 -> norm1 -> relu ----
    y1 = _conv_bn_relu(a0_ref, w1_ref, n=n, l_in=l0, l_in_pad=p0, l_out=l1,
                       k_sz=kernel_sizes[0], c_in=c0, stride=strides[0])
    for b in range(n):
        a1_ref[pl.ds(b * p1, l1), :] = y1[b * l1:(b + 1) * l1, :]

    # ---- block 2: conv3 -> norm3 -> relu ----
    y2 = _conv_bn_relu(a1_ref, w2_ref, n=n, l_in=l1, l_in_pad=p1, l_out=l2,
                       k_sz=kernel_sizes[1], c_in=c1, stride=strides[1])
    for b in range(n):
        a2_ref[pl.ds(b * p2, l2), :] = y2[b * l2:(b + 1) * l2, :]

    # ---- block 3: conv5 -> norm5 -> relu, written directly in NCL (flatten) order ----
    y3 = _conv_bn_relu(a2_ref, w3_ref, n=n, l_in=l2, l_in_pad=p2, l_out=l3,
                       k_sz=kernel_sizes[2], c_in=c2, stride=strides[2])
    for b in range(n):
        o_ref[b] = jnp.transpose(y3[b * l3:(b + 1) * l3, :], (1, 0))   # (c3, l3)


# ------------------------------ JAX wrapper ----------------------------------

def _full_spec(shape):
    zeros = (0,) * len(shape)
    return pl.BlockSpec(shape, lambda i: zeros)


def convnet1d_forward(x_ncl, params, strides):
    """x: (N, C0, L) f32; params: [(w (Cout,Cin,K), b (Cout,)), ...] -> (N, C3*L3)."""
    n, c0, length = x_ncl.shape

    kernel_sizes = [w.shape[2] for (w, _b) in params]
    chans = [c0] + [w.shape[0] for (w, _b) in params]

    # Static per-layer geometry (PyTorch 'valid' conv length, floor division).
    lens = [length]
    for (w, _b), s in zip(params, strides):
        lens.append((lens[-1] - w.shape[2]) // s + 1)
    lens_pad = [_round_up(l, 8) for l in lens[:3]]     # 8-sublane-aligned per-batch blocks

    # (C_out, C_in, K) -> (K*C_in, C_out): one fused MXU matmul per layer.
    # Biases dropped — cancelled exactly by the affine-free training-mode BN that follows.
    wts = [jnp.transpose(w, (2, 1, 0)).reshape(w.shape[2] * w.shape[1], w.shape[0])
             .astype(jnp.float32)
           for (w, _b) in params]

    kernel = functools.partial(_fused_kernel, n=n, strides=tuple(strides),
                               kernel_sizes=tuple(kernel_sizes), lens=tuple(lens),
                               lens_pad=tuple(lens_pad), chans=tuple(chans))

    out_ncl = pl.pallas_call(
        kernel,
        out_shape=jax.ShapeDtypeStruct((n, chans[3], lens[3]), jnp.float32),
        grid=(1,),
        in_specs=[_full_spec(x_ncl.shape)] + [_full_spec(w.shape) for w in wts],
        out_specs=_full_spec((n, chans[3], lens[3])),
        scratch_shapes=[
            pltpu.VMEM((n * lens_pad[0], chans[0]), jnp.float32),   # norm0 output
            pltpu.VMEM((n * lens_pad[1], chans[1]), jnp.float32),   # block-1 activation
            pltpu.VMEM((n * lens_pad[2], chans[2]), jnp.float32),   # block-2 activation
        ],
        compiler_params=pltpu.CompilerParams(
            dimension_semantics=("arbitrary",),
            vmem_limit_bytes=32 * 1024 * 1024,      # explicit (v5e scoped default is 16 MiB)
        ),
    )(x_ncl.astype(jnp.float32), *wts)

    # nn.Flatten(): kernel already emitted NCL order -> contiguous reshape only, no transpose.
    return out_ncl.reshape(n, chans[3] * lens[3])


# ---------------------------- pure-JAX reference -----------------------------

def _ref_forward(x, params, strides):
    def bn(y):
        mu = y.mean(axis=(0, 2), keepdims=True)
        var = ((y - mu) ** 2).mean(axis=(0, 2), keepdims=True)
        return (y - mu) / jnp.sqrt(var + EPS)

    x = bn(x)
    for (w, b), s in zip(params, strides):
        y = jax.lax.conv_general_dilated(
            x, w, window_strides=(s,), padding='VALID',
            dimension_numbers=('NCH', 'OIH', 'NCH')) + b[None, :, None]
        x = jnp.maximum(bn(y), 0.0)
    return x.reshape(x.shape[0], -1)


# --------------------------------- main ---------------------------------------

if __name__ == "__main__":
    key = jax.random.PRNGKey(0)

    # Small shapes consistent with the module (in_channels / layers / kernel_sizes / strides).
    N, C0, L = 2, 4, 64
    layers = [8, 16, 32]
    kernel_sizes = [4, 4, 2]
    strides = [2, 2, 1]

    keys = jax.random.split(key, 7)
    x = jax.random.normal(keys[0], (N, C0, L), dtype=jnp.float32)

    params = []
    c_in = C0
    for i, (c_out, k) in enumerate(zip(layers, kernel_sizes)):
        w = 0.1 * jax.random.normal(keys[1 + 2 * i], (c_out, c_in, k), dtype=jnp.float32)
        b = 0.1 * jax.random.normal(keys[2 + 2 * i], (c_out,), dtype=jnp.float32)
        params.append((w, b))
        c_in = c_out

    out = jax.block_until_ready(convnet1d_forward(x, params, strides))
    ref = jax.block_until_ready(_ref_forward(x, params, strides))

    assert out.shape == ref.shape, (out.shape, ref.shape)
    assert jnp.allclose(out, ref, atol=1e-4, rtol=1e-4), float(jnp.max(jnp.abs(out - ref)))
    print("KERNEL_OK")
</pallas_src>

<mosaic_0001>
module attributes {stable_mosaic.version = 11 : i64} {
  func.func @_fused_kernel(%arg0: i32, %arg1: memref<2x4x64xf32, #tpu.memory_space<vmem>>, %arg2: memref<16x8xf32, #tpu.memory_space<vmem>>, %arg3: memref<32x16xf32, #tpu.memory_space<vmem>>, %arg4: memref<32x32xf32, #tpu.memory_space<vmem>>, %arg5: memref<2x32x13xf32, #tpu.memory_space<vmem>>, %arg6: memref<128x4xf32, #tpu.memory_space<vmem>>, %arg7: memref<64x8xf32, #tpu.memory_space<vmem>>, %arg8: memref<32x16xf32, #tpu.memory_space<vmem>>) attributes {dimension_semantics = [#tpu.dimension_semantics<arbitrary>], iteration_bounds = array<i64: 1>, scalar_prefetch = 0 : i64, scratch_operands = 3 : i64, tpu.core_type = #tpu.core_type<tc>, window_params = [{pipeline_mode = #tpu.pipeline_mode<synchronous>, transform_indices = @transform_0, window_bounds = array<i64: 2, 4, 64>}, {pipeline_mode = #tpu.pipeline_mode<synchronous>, transform_indices = @transform_1, window_bounds = array<i64: 16, 8>}, {pipeline_mode = #tpu.pipeline_mode<synchronous>, transform_indices = @transform_2, window_bounds = array<i64: 32, 16>}, {pipeline_mode = #tpu.pipeline_mode<synchronous>, transform_indices = @transform_3, window_bounds = array<i64: 32, 32>}, {pipeline_mode = #tpu.pipeline_mode<synchronous>, transform_indices = @transform_4, window_bounds = array<i64: 2, 32, 13>}]} {
    %c0 = arith.constant 0 : index
    %c0_0 = arith.constant 0 : index
    %c0_1 = arith.constant 0 : index
    %0 = vector.load %arg1[%c0, %c0_0, %c0_1] : memref<2x4x64xf32, #tpu.memory_space<vmem>>, vector<1x4x64xf32>
    %1 = vector.shape_cast %0 : vector<1x4x64xf32> to vector<4x64xf32>
    %2 = tpu.transpose %1, [1, 0] : vector<4x64xf32> -> vector<64x4xf32>
    %c1 = arith.constant 1 : index
    %c0_2 = arith.constant 0 : index
    %c0_3 = arith.constant 0 : index
    %3 = vector.load %arg1[%c1, %c0_2, %c0_3] : memref<2x4x64xf32, #tpu.memory_space<vmem>>, vector<1x4x64xf32>
    %4 = vector.shape_cast %3 : vector<1x4x64xf32> to vector<4x64xf32>
    %5 = tpu.transpose %4, [1, 0] : vector<4x64xf32> -> vector<64x4xf32>
    %6 = tpu.concatenate %2, %5 in 0 : vector<64x4xf32>, vector<64x4xf32> -> vector<128x4xf32>
    %cst = arith.constant dense<0.000000e+00> : vector<4xf32>
    %7 = vector.multi_reduction <add>, %6, %cst [0] : vector<128x4xf32> to vector<4xf32>
    %8 = vector.shape_cast %7 : vector<4xf32> to vector<1x4xf32>
    %cst_4 = arith.constant 1.280000e+02 : f32
    %9 = vector.broadcast %cst_4 : f32 to vector<1x4xf32>
    %10 = arith.divf %8, %9 : vector<1x4xf32>
    %11 = vector.broadcast %10 : vector<1x4xf32> to vector<128x4xf32>
    %12 = arith.subf %6, %11 : vector<128x4xf32>
    %13 = arith.mulf %12, %12 : vector<128x4xf32>
    %cst_5 = arith.constant dense<0.000000e+00> : vector<4xf32>
    %14 = vector.multi_reduction <add>, %13, %cst_5 [0] : vector<128x4xf32> to vector<4xf32>
    %15 = vector.shape_cast %14 : vector<4xf32> to vector<1x4xf32>
    %cst_6 = arith.constant 1.280000e+02 : f32
    %16 = vector.broadcast %cst_6 : f32 to vector<1x4xf32>
    %17 = arith.divf %15, %16 : vector<1x4xf32>
    %18 = vector.broadcast %10 : vector<1x4xf32> to vector<128x4xf32>
    %19 = arith.subf %6, %18 : vector<128x4xf32>
    %cst_7 = arith.constant 9.99999974E-6 : f32
    %20 = vector.broadcast %cst_7 : f32 to vector<1x4xf32>
    %21 = arith.addf %17, %20 : vector<1x4xf32>
    %22 = math.rsqrt %21 : vector<1x4xf32>
    %23 = vector.broadcast %22 : vector<1x4xf32> to vector<128x4xf32>
    %24 = arith.mulf %19, %23 : vector<128x4xf32>
    %25 = vector.extract_strided_slice %24 {offsets = [0, 0], sizes = [64, 4], strides = [1, 1]} : vector<128x4xf32> to vector<64x4xf32>
    %c0_8 = arith.constant 0 : index
    %c0_9 = arith.constant 0 : index
    %26 = vector.load %arg6[%c0_8, %c0_9] : memref<128x4xf32, #tpu.memory_space<vmem>>, vector<64x4xf32>
    tpu.vector_store %arg6[%c0_8, %c0_9], %25 {strides = array<i32>} : memref<128x4xf32, #tpu.memory_space<vmem>>, vector<64x4xf32>,
    %27 = vector.extract_strided_slice %24 {offsets = [64, 0], sizes = [64, 4], strides = [1, 1]} : vector<128x4xf32> to vector<64x4xf32>
    %c64 = arith.constant 64 : index
    %c0_10 = arith.constant 0 : index
    %28 = vector.load %arg6[%c64, %c0_10] : memref<128x4xf32, #tpu.memory_space<vmem>>, vector<64x4xf32>
    tpu.vector_store %arg6[%c64, %c0_10], %27 {strides = array<i32>} : memref<128x4xf32, #tpu.memory_space<vmem>>, vector<64x4xf32>,
    %c0_11 = arith.constant 0 : index
    %c0_12 = arith.constant 0 : index
    %29 = tpu.strided_load %arg6[%c0_11, %c0_12] {strides = array<i32: 2, 1>} : memref<128x4xf32, #tpu.memory_space<vmem>>, vector<31x4xf32>
    %c1_13 = arith.constant 1 : index
    %c0_14 = arith.constant 0 : index
    %30 = tpu.strided_load %arg6[%c1_13, %c0_14] {strides = array<i32: 2, 1>} : memref<128x4xf32, #tpu.memory_space<vmem>>, vector<31x4xf32>
    %c2 = arith.constant 2 : index
    %c0_15 = arith.constant 0 : index
    %31 = tpu.strided_load %arg6[%c2, %c0_15] {strides = array<i32: 2, 1>} : memref<128x4xf32, #tpu.memory_space<vmem>>, vector<31x4xf32>
    %c3 = arith.constant 3 : index
    %c0_16 = arith.constant 0 : index
    %32 = tpu.strided_load %arg6[%c3, %c0_16] {strides = array<i32: 2, 1>} : memref<128x4xf32, #tpu.memory_space<vmem>>, vector<31x4xf32>
    %33 = tpu.concatenate %29, %30, %31, %32 in 1 : vector<31x4xf32>, vector<31x4xf32>, vector<31x4xf32>, vector<31x4xf32> -> vector<31x16xf32>
    %c64_17 = arith.constant 64 : index
    %c0_18 = arith.constant 0 : index
    %34 = tpu.strided_load %arg6[%c64_17, %c0_18] {strides = array<i32: 2, 1>} : memref<128x4xf32, #tpu.memory_space<vmem>>, vector<31x4xf32>
    %c65 = arith.constant 65 : index
    %c0_19 = arith.constant 0 : index
    %35 = tpu.strided_load %arg6[%c65, %c0_19] {strides = array<i32: 2, 1>} : memref<128x4xf32, #tpu.memory_space<vmem>>, vector<31x4xf32>
    %c66 = arith.constant 66 : index
    %c0_20 = arith.constant 0 : index
    %36 = tpu.strided_load %arg6[%c66, %c0_20] {strides = array<i32: 2, 1>} : memref<128x4xf32, #tpu.memory_space<vmem>>, vector<31x4xf32>
    %c67 = arith.constant 67 : index
    %c0_21 = arith.constant 0 : index
    %37 = tpu.strided_load %arg6[%c67, %c0_21] {strides = array<i32: 2, 1>} : memref<128x4xf32, #tpu.memory_space<vmem>>, vector<31x4xf32>
    %38 = tpu.concatenate %34, %35, %36, %37 in 1 : vector<31x4xf32>, vector<31x4xf32>, vector<31x4xf32>, vector<31x4xf32> -> vector<31x16xf32>
    %39 = tpu.concatenate %33, %38 in 0 : vector<31x16xf32>, vector<31x16xf32> -> vector<62x16xf32>
    %c0_22 = arith.constant 0 : index
    %c0_23 = arith.constant 0 : index
    %40 = vector.load %arg2[%c0_22, %c0_23] : memref<16x8xf32, #tpu.memory_space<vmem>>, vector<16x8xf32>
    %cst_24 = arith.constant dense<0.000000e+00> : vector<62x8xf32>
    %41 = tpu.matmul %39, %40, %cst_24 {dimension_numbers = #tpu.dot_dimension_numbers<[1], [0], [0], [1], [0, 0, 1, 1], [], []>} : vector<62x16xf32>, vector<16x8xf32>, vector<62x8xf32> -> vector<62x8xf32>
    %cst_25 = arith.constant dense<0.000000e+00> : vector<8xf32>
    %42 = vector.multi_reduction <add>, %41, %cst_25 [0] : vector<62x8xf32> to vector<8xf32>
    %43 = vector.shape_cast %42 : vector<8xf32> to vector<1x8xf32>
    %cst_26 = arith.constant 6.200000e+01 : f32
    %44 = vector.broadcast %cst_26 : f32 to vector<1x8xf32>
    %45 = arith.divf %43, %44 : vector<1x8xf32>
    %46 = vector.broadcast %45 : vector<1x8xf32> to vector<62x8xf32>
    %47 = arith.subf %41, %46 : vector<62x8xf32>
    %48 = arith.mulf %47, %47 : vector<62x8xf32>
    %cst_27 = arith.constant dense<0.000000e+00> : vector<8xf32>
    %49 = vector.multi_reduction <add>, %48, %cst_27 [0] : vector<62x8xf32> to vector<8xf32>
    %50 = vector.shape_cast %49 : vector<8xf32> to vector<1x8xf32>
    %cst_28 = arith.constant 6.200000e+01 : f32
    %51 = vector.broadcast %cst_28 : f32 to vector<1x8xf32>
    %52 = arith.divf %50, %51 : vector<1x8xf32>
    %53 = vector.broadcast %45 : vector<1x8xf32> to vector<62x8xf32>
    %54 = arith.subf %41, %53 : vector<62x8xf32>
    %cst_29 = arith.constant 9.99999974E-6 : f32
    %55 = vector.broadcast %cst_29 : f32 to vector<1x8xf32>
    %56 = arith.addf %52, %55 : vector<1x8xf32>
    %57 = math.rsqrt %56 : vector<1x8xf32>
    %58 = vector.broadcast %57 : vector<1x8xf32> to vector<62x8xf32>
    %59 = arith.mulf %54, %58 : vector<62x8xf32>
    %cst_30 = arith.constant 0.000000e+00 : f32
    %60 = vector.broadcast %cst_30 : f32 to vector<62x8xf32>
    %61 = arith.maximumf %59, %60 : vector<62x8xf32>
    %62 = vector.extract_strided_slice %61 {offsets = [0, 0], sizes = [31, 8], strides = [1, 1]} : vector<62x8xf32> to vector<31x8xf32>
    %c0_31 = arith.constant 0 : index
    %c0_32 = arith.constant 0 : index
    %63 = vector.load %arg7[%c0_31, %c0_32] : memref<64x8xf32, #tpu.memory_space<vmem>>, vector<31x8xf32>
    tpu.vector_store %arg7[%c0_31, %c0_32], %62 {strides = array<i32>} : memref<64x8xf32, #tpu.memory_space<vmem>>, vector<31x8xf32>,
    %64 = vector.extract_strided_slice %61 {offsets = [31, 0], sizes = [31, 8], strides = [1, 1]} : vector<62x8xf32> to vector<31x8xf32>
    %c32 = arith.constant 32 : index
    %c0_33 = arith.constant 0 : index
    %65 = vector.load %arg7[%c32, %c0_33] : memref<64x8xf32, #tpu.memory_space<vmem>>, vector<31x8xf32>
    tpu.vector_store %arg7[%c32, %c0_33], %64 {strides = array<i32>} : memref<64x8xf32, #tpu.memory_space<vmem>>, vector<31x8xf32>,
    %c0_34 = arith.constant 0 : index
    %c0_35 = arith.constant 0 : index
    %66 = tpu.strided_load %arg7[%c0_34, %c0_35] {strides = array<i32: 2, 1>} : memref<64x8xf32, #tpu.memory_space<vmem>>, vector<14x8xf32>
    %c1_36 = arith.constant 1 : index
    %c0_37 = arith.constant 0 : index
    %67 = tpu.strided_load %arg7[%c1_36, %c0_37] {strides = array<i32: 2, 1>} : memref<64x8xf32, #tpu.memory_space<vmem>>, vector<14x8xf32>
    %c2_38 = arith.constant 2 : index
    %c0_39 = arith.constant 0 : index
    %68 = tpu.strided_load %arg7[%c2_38, %c0_39] {strides = array<i32: 2, 1>} : memref<64x8xf32, #tpu.memory_space<vmem>>, vector<14x8xf32>
    %c3_40 = arith.constant 3 : index
    %c0_41 = arith.constant 0 : index
    %69 = tpu.strided_load %arg7[%c3_40, %c0_41] {strides = array<i32: 2, 1>} : memref<64x8xf32, #tpu.memory_space<vmem>>, vector<14x8xf32>
    %70 = tpu.concatenate %66, %67, %68, %69 in 1 : vector<14x8xf32>, vector<14x8xf32>, vector<14x8xf32>, vector<14x8xf32> -> vector<14x32xf32>
    %c32_42 = arith.constant 32 : index
    %c0_43 = arith.constant 0 : index
    %71 = tpu.strided_load %arg7[%c32_42, %c0_43] {strides = array<i32: 2, 1>} : memref<64x8xf32, #tpu.memory_space<vmem>>, vector<14x8xf32>
    %c33 = arith.constant 33 : index
    %c0_44 = arith.constant 0 : index
    %72 = tpu.strided_load %arg7[%c33, %c0_44] {strides = array<i32: 2, 1>} : memref<64x8xf32, #tpu.memory_space<vmem>>, vector<14x8xf32>
    %c34 = arith.constant 34 : index
    %c0_45 = arith.constant 0 : index
    %73 = tpu.strided_load %arg7[%c34, %c0_45] {strides = array<i32: 2, 1>} : memref<64x8xf32, #tpu.memory_space<vmem>>, vector<14x8xf32>
    %c35 = arith.constant 35 : index
    %c0_46 = arith.constant 0 : index
    %74 = tpu.strided_load %arg7[%c35, %c0_46] {strides = array<i32: 2, 1>} : memref<64x8xf32, #tpu.memory_space<vmem>>, vector<14x8xf32>
    %75 = tpu.concatenate %71, %72, %73, %74 in 1 : vector<14x8xf32>, vector<14x8xf32>, vector<14x8xf32>, vector<14x8xf32> -> vector<14x32xf32>
    %76 = tpu.concatenate %70, %75 in 0 : vector<14x32xf32>, vector<14x32xf32> -> vector<28x32xf32>
    %c0_47 = arith.constant 0 : index
    %c0_48 = arith.constant 0 : index
    %77 = vector.load %arg3[%c0_47, %c0_48] : memref<32x16xf32, #tpu.memory_space<vmem>>, vector<32x16xf32>
    %cst_49 = arith.constant dense<0.000000e+00> : vector<28x16xf32>
    %78 = tpu.matmul %76, %77, %cst_49 {dimension_numbers = #tpu.dot_dimension_numbers<[1], [0], [0], [1], [0, 0, 1, 1], [], []>} : vector<28x32xf32>, vector<32x16xf32>, vector<28x16xf32> -> vector<28x16xf32>
    %cst_50 = arith.constant dense<0.000000e+00> : vector<16xf32>
    %79 = vector.multi_reduction <add>, %78, %cst_50 [0] : vector<28x16xf32> to vector<16xf32>
    %80 = vector.shape_cast %79 : vector<16xf32> to vector<1x16xf32>
    %cst_51 = arith.constant 2.800000e+01 : f32
    %81 = vector.broadcast %cst_51 : f32 to vector<1x16xf32>
    %82 = arith.divf %80, %81 : vector<1x16xf32>
    %83 = vector.broadcast %82 : vector<1x16xf32> to vector<28x16xf32>
    %84 = arith.subf %78, %83 : vector<28x16xf32>
    %85 = arith.mulf %84, %84 : vector<28x16xf32>
    %cst_52 = arith.constant dense<0.000000e+00> : vector<16xf32>
    %86 = vector.multi_reduction <add>, %85, %cst_52 [0] : vector<28x16xf32> to vector<16xf32>
    %87 = vector.shape_cast %86 : vector<16xf32> to vector<1x16xf32>
    %cst_53 = arith.constant 2.800000e+01 : f32
    %88 = vector.broadcast %cst_53 : f32 to vector<1x16xf32>
    %89 = arith.divf %87, %88 : vector<1x16xf32>
    %90 = vector.broadcast %82 : vector<1x16xf32> to vector<28x16xf32>
    %91 = arith.subf %78, %90 : vector<28x16xf32>
    %cst_54 = arith.constant 9.99999974E-6 : f32
    %92 = vector.broadcast %cst_54 : f32 to vector<1x16xf32>
    %93 = arith.addf %89, %92 : vector<1x16xf32>
    %94 = math.rsqrt %93 : vector<1x16xf32>
    %95 = vector.broadcast %94 : vector<1x16xf32> to vector<28x16xf32>
    %96 = arith.mulf %91, %95 : vector<28x16xf32>
    %cst_55 = arith.constant 0.000000e+00 : f32
    %97 = vector.broadcast %cst_55 : f32 to vector<28x16xf32>
    %98 = arith.maximumf %96, %97 : vector<28x16xf32>
    %99 = vector.extract_strided_slice %98 {offsets = [0, 0], sizes = [14, 16], strides = [1, 1]} : vector<28x16xf32> to vector<14x16xf32>
    %c0_56 = arith.constant 0 : index
    %c0_57 = arith.constant 0 : index
    %100 = vector.load %arg8[%c0_56, %c0_57] : memref<32x16xf32, #tpu.memory_space<vmem>>, vector<14x16xf32>
    tpu.vector_store %arg8[%c0_56, %c0_57], %99 {strides = array<i32>} : memref<32x16xf32, #tpu.memory_space<vmem>>, vector<14x16xf32>,
    %101 = vector.extract_strided_slice %98 {offsets = [14, 0], sizes = [14, 16], strides = [1, 1]} : vector<28x16xf32> to vector<14x16xf32>
    %c16 = arith.constant 16 : index
    %c0_58 = arith.constant 0 : index
    %102 = vector.load %arg8[%c16, %c0_58] : memref<32x16xf32, #tpu.memory_space<vmem>>, vector<14x16xf32>
    tpu.vector_store %arg8[%c16, %c0_58], %101 {strides = array<i32>} : memref<32x16xf32, #tpu.memory_space<vmem>>, vector<14x16xf32>,
    %c0_59 = arith.constant 0 : index
    %c0_60 = arith.constant 0 : index
    %103 = vector.load %arg8[%c0_59, %c0_60] : memref<32x16xf32, #tpu.memory_space<vmem>>, vector<13x16xf32>
    %c1_61 = arith.constant 1 : index
    %c0_62 = arith.constant 0 : index
    %104 = vector.load %arg8[%c1_61, %c0_62] : memref<32x16xf32, #tpu.memory_space<vmem>>, vector<13x16xf32>
    %105 = tpu.concatenate %103, %104 in 1 : vector<13x16xf32>, vector<13x16xf32> -> vector<13x32xf32>
    %c16_63 = arith.constant 16 : index
    %c0_64 = arith.constant 0 : index
    %106 = vector.load %arg8[%c16_63, %c0_64] : memref<32x16xf32, #tpu.memory_space<vmem>>, vector<13x16xf32>
    %c17 = arith.constant 17 : index
    %c0_65 = arith.constant 0 : index
    %107 = vector.load %arg8[%c17, %c0_65] : memref<32x16xf32, #tpu.memory_space<vmem>>, vector<13x16xf32>
    %108 = tpu.concatenate %106, %107 in 1 : vector<13x16xf32>, vector<13x16xf32> -> vector<13x32xf32>
    %109 = tpu.concatenate %105, %108 in 0 : vector<13x32xf32>, vector<13x32xf32> -> vector<26x32xf32>
    %c0_66 = arith.constant 0 : index
    %c0_67 = arith.constant 0 : index
    %110 = vector.load %arg4[%c0_66, %c0_67] : memref<32x32xf32, #tpu.memory_space<vmem>>, vector<32x32xf32>
    %cst_68 = arith.constant dense<0.000000e+00> : vector<26x32xf32>
    %111 = tpu.matmul %109, %110, %cst_68 {dimension_numbers = #tpu.dot_dimension_numbers<[1], [0], [0], [1], [0, 0, 1, 1], [], []>} : vector<26x32xf32>, vector<32x32xf32>, vector<26x32xf32> -> vector<26x32xf32>
    %cst_69 = arith.constant dense<0.000000e+00> : vector<32xf32>
    %112 = vector.multi_reduction <add>, %111, %cst_69 [0] : vector<26x32xf32> to vector<32xf32>
    %113 = vector.shape_cast %112 : vector<32xf32> to vector<1x32xf32>
    %cst_70 = arith.constant 2.600000e+01 : f32
    %114 = vector.broadcast %cst_70 : f32 to vector<1x32xf32>
    %115 = arith.divf %113, %114 : vector<1x32xf32>
    %116 = vector.broadcast %115 : vector<1x32xf32> to vector<26x32xf32>
    %117 = arith.subf %111, %116 : vector<26x32xf32>
    %118 = arith.mulf %117, %117 : vector<26x32xf32>
    %cst_71 = arith.constant dense<0.000000e+00> : vector<32xf32>
    %119 = vector.multi_reduction <add>, %118, %cst_71 [0] : vector<26x32xf32> to vector<32xf32>
    %120 = vector.shape_cast %119 : vector<32xf32> to vector<1x32xf32>
    %cst_72 = arith.constant 2.600000e+01 : f32
    %121 = vector.broadcast %cst_72 : f32 to vector<1x32xf32>
    %122 = arith.divf %120, %121 : vector<1x32xf32>
    %123 = vector.broadcast %115 : vector<1x32xf32> to vector<26x32xf32>
    %124 = arith.subf %111, %123 : vector<26x32xf32>
    %cst_73 = arith.constant 9.99999974E-6 : f32
    %125 = vector.broadcast %cst_73 : f32 to vector<1x32xf32>
    %126 = arith.addf %122, %125 : vector<1x32xf32>
    %127 = math.rsqrt %126 : vector<1x32xf32>
    %128 = vector.broadcast %127 : vector<1x32xf32> to vector<26x32xf32>
    %129 = arith.mulf %124, %128 : vector<26x32xf32>
    %cst_74 = arith.constant 0.000000e+00 : f32
    %130 = vector.broadcast %cst_74 : f32 to vector<26x32xf32>
    %131 = arith.maximumf %129, %130 : vector<26x32xf32>
    %132 = vector.extract_strided_slice %131 {offsets = [0, 0], sizes = [13, 32], strides = [1, 1]} : vector<26x32xf32> to vector<13x32xf32>
    %133 = tpu.transpose %132, [1, 0] : vector<13x32xf32> -> vector<32x13xf32>
    %c0_75 = arith.constant 0 : index
    %c0_76 = arith.constant 0 : index
    %c0_77 = arith.constant 0 : index
    %134 = vector.load %arg5[%c0_75, %c0_76, %c0_77] : memref<2x32x13xf32, #tpu.memory_space<vmem>>, vector<1x32x13xf32>
    %135 = vector.shape_cast %134 : vector<1x32x13xf32> to vector<32x13xf32>
    %136 = vector.shape_cast %133 : vector<32x13xf32> to vector<1x32x13xf32>
    tpu.vector_store %arg5[%c0_75, %c0_76, %c0_77], %136 {strides = array<i32>} : memref<2x32x13xf32, #tpu.memory_space<vmem>>, vector<1x32x13xf32>,
    %137 = vector.extract_strided_slice %131 {offsets = [13, 0], sizes = [13, 32], strides = [1, 1]} : vector<26x32xf32> to vector<13x32xf32>
    %138 = tpu.transpose %137, [1, 0] : vector<13x32xf32> -> vector<32x13xf32>
    %c1_78 = arith.constant 1 : index
    %c0_79 = arith.constant 0 : index
    %c0_80 = arith.constant 0 : index
    %139 = vector.load %arg5[%c1_78, %c0_79, %c0_80] : memref<2x32x13xf32, #tpu.memory_space<vmem>>, vector<1x32x13xf32>
    %140 = vector.shape_cast %139 : vector<1x32x13xf32> to vector<32x13xf32>
    %141 = vector.shape_cast %138 : vector<32x13xf32> to vector<1x32x13xf32>
    tpu.vector_store %arg5[%c1_78, %c0_79, %c0_80], %141 {strides = array<i32>} : memref<2x32x13xf32, #tpu.memory_space<vmem>>, vector<1x32x13xf32>,
    return
  }
  func.func @transform_0(%arg0: i32) -> (i32, i32, i32) {
    %c0_i32 = arith.constant 0 : i32
    %c0_i32_0 = arith.constant 0 : i32
    %c0_i32_1 = arith.constant 0 : i32
    %c0_i32_2 = arith.constant 0 : i32
    return %c0_i32, %c0_i32_0, %c0_i32_1 : i32, i32, i32
  }
  func.func @transform_1(%arg0: i32) -> (i32, i32) {
    %c0_i32 = arith.constant 0 : i32
    %c0_i32_0 = arith.constant 0 : i32
    %c0_i32_1 = arith.constant 0 : i32
    return %c0_i32, %c0_i32_0 : i32, i32
  }
  func.func @transform_2(%arg0: i32) -> (i32, i32) {
    %c0_i32 = arith.constant 0 : i32
    %c0_i32_0 = arith.constant 0 : i32
    %c0_i32_1 = arith.constant 0 : i32
    return %c0_i32, %c0_i32_0 : i32, i32
  }
  func.func @transform_3(%arg0: i32) -> (i32, i32) {
    %c0_i32 = arith.constant 0 : i32
    %c0_i32_0 = arith.constant 0 : i32
    %c0_i32_1 = arith.constant 0 : i32
    return %c0_i32, %c0_i32_0 : i32, i32
  }
  func.func @transform_4(%arg0: i32) -> (i32, i32, i32) {
    %c0_i32 = arith.constant 0 : i32
    %c0_i32_0 = arith.constant 0 : i32
    %c0_i32_1 = arith.constant 0 : i32
    %c0_i32_2 = arith.constant 0 : i32
    return %c0_i32, %c0_i32_0, %c0_i32_1 : i32, i32, i32
  }
}

</mosaic_0001>

<llo_original>
// kernel: tpu_custom_call.1
$region0: #{tpu_custom_call.1}
  #allocation0 [shape = 'u32[]', space=smem, size = 0x4, offset = 0x4, fixed_abs, tag = 'smem constant byte address 0x4 - core index']
  #allocation1 [shape = 'u32[144,128]{1,0:T(1,128)}', space=vmem, size = 0x12000, scoped, tag = 'internal scratch']
  #allocation2 [shape = 'f32[128,4]{1,0:T(8,128)}', space=vmem, size = 0x10000, scoped, tag = 'scratch operand']
  #allocation3 [shape = 'f32[64,8]{1,0:T(8,128)}', space=vmem, size = 0x8000, scoped, tag = 'scratch operand']
  #allocation4 [shape = 'f32[32,16]{1,0:T(8,128)}', space=vmem, size = 0x4000, scoped, tag = 'scratch operand']
  %s0 = inlined_call_operand.vmem [shape: f32[2,4,64], index: 0, kind: input, shape index: {}]
  %s1 = inlined_call_operand.vmem [shape: f32[16,8], index: 1, kind: input, shape index: {}]
  %s2 = inlined_call_operand.vmem [shape: f32[32,16], index: 2, kind: input, shape index: {}]
  %s3 = inlined_call_operand.vmem [shape: f32[32,32], index: 3, kind: input, shape index: {}]
  %s4 = inlined_call_operand.vmem [shape: f32[2,32,13], index: 4, kind: output, shape index: {}]
  %s5 = sld [smem:[#allocation0]]
  $region26: #{tpu_custom_call.1} parent=0
    _
  %s7 = ssub.s32 1, %s5
  %s8 = scalar_select 0, %s7, %s5
  // Predicated region
  $region2: #{tpu_custom_call.1} parent=0 // pred_check
    _
  $region3: #{tpu_custom_call.1} parent=0 // pred_check_branch
    %10 = sbr.rel (0) target = $region5
  $region4: #{tpu_custom_call.1} parent=0 // pred_region
    _
  $region5: #{tpu_custom_call.1} parent=0 // pred_fallthru
    _
  // Predicated region
  $region6: #{tpu_custom_call.1} parent=0 // pred_check
    _
  $region7: #{tpu_custom_call.1} parent=0 // pred_check_branch
    %12 = sbr.rel (0) target = $region9
  $region8: #{tpu_custom_call.1} parent=0 // pred_region
    _
  $region9: #{tpu_custom_call.1} parent=0 // pred_fallthru
    _
  // Predicated region
  $region10: #{tpu_custom_call.1} parent=0 // pred_check
    _
  $region11: #{tpu_custom_call.1} parent=0 // pred_check_branch
    %14 = sbr.rel (0) target = $region13
  $region12: #{tpu_custom_call.1} parent=0 // pred_region
    _
  $region13: #{tpu_custom_call.1} parent=0 // pred_fallthru
    _
  // Predicated region
  $region14: #{tpu_custom_call.1} parent=0 // pred_check
    _
  $region15: #{tpu_custom_call.1} parent=0 // pred_check_branch
    %16 = sbr.rel (0) target = $region17
  $region16: #{tpu_custom_call.1} parent=0 // pred_region
    _
  $region17: #{tpu_custom_call.1} parent=0 // pred_fallthru
    _
  %v17 = vld [vmem:[%s0] sm:$0xf]
  %18 = vxpose.xlu0.b32.start [1/16] %v17, 128
  %19 = vxpose.xlu0.b32.cont [2/16] 0.0, 128
  %20 = vxpose.xlu0.b32.cont [3/16] 0.0, 128
  %21 = vxpose.xlu0.b32.cont [4/16] 0.0, 128
  %22 = vxpose.xlu0.b32.cont [5/16] 0.0, 128
  %23 = vxpose.xlu0.b32.cont [6/16] 0.0, 128
  %24 = vxpose.xlu0.b32.cont [7/16] 0.0, 128
  %25 = vxpose.xlu0.b32.cont [8/16] 0.0, 128
  %26 = vxpose.xlu0.b32.cont [9/16] 0.0, 128
  %27 = vxpose.xlu0.b32.cont [10/16] 0.0, 128
  %28 = vxpose.xlu0.b32.cont [11/16] 0.0, 128
  %29 = vxpose.xlu0.b32.cont [12/16] 0.0, 128
  %30 = vxpose.xlu0.b32.cont [13/16] 0.0, 128
  %31 = vxpose.xlu0.b32.cont [14/16] 0.0, 128
  %32 = vxpose.xlu0.b32.cont [15/16] 0.0, 128
  %33 = vxpose.xlu0.b32.end [16/16] 0.0, 128
  %v34 = vpop.trf.xlu0
  %v35 = vpop.trf.xlu0
  %v36 = vpop.trf.xlu0
  %v37 = vpop.trf.xlu0
  %v38 = vpop.trf.xlu0
  %v39 = vpop.trf.xlu0
  %v40 = vpop.trf.xlu0
  %v41 = vpop.trf.xlu0
  %v42 = vpop.trf.xlu0
  %v43 = vpop.trf.xlu0
  %v44 = vpop.trf.xlu0
  %v45 = vpop.trf.xlu0
  %v46 = vpop.trf.xlu0
  %v47 = vpop.trf.xlu0
  %v48 = vpop.trf.xlu0
  %v49 = vpop.trf.xlu0
  %s50 = scalar_lea.vmem %s0, 4
  %v51 = vld [vmem:[%s50] sm:$0xf]
  %52 = vxpose.xlu0.b32.start [1/16] %v51, 128
  %53 = vxpose.xlu0.b32.cont [2/16] 0.0, 128
  %54 = vxpose.xlu0.b32.cont [3/16] 0.0, 128
  %55 = vxpose.xlu0.b32.cont [4/16] 0.0, 128
  %56 = vxpose.xlu0.b32.cont [5/16] 0.0, 128
  %57 = vxpose.xlu0.b32.cont [6/16] 0.0, 128
  %58 = vxpose.xlu0.b32.cont [7/16] 0.0, 128
  %59 = vxpose.xlu0.b32.cont [8/16] 0.0, 128
  %60 = vxpose.xlu0.b32.cont [9/16] 0.0, 128
  %61 = vxpose.xlu0.b32.cont [10/16] 0.0, 128
  %62 = vxpose.xlu0.b32.cont [11/16] 0.0, 128
  %63 = vxpose.xlu0.b32.cont [12/16] 0.0, 128
  %64 = vxpose.xlu0.b32.cont [13/16] 0.0, 128
  %65 = vxpose.xlu0.b32.cont [14/16] 0.0, 128
  %66 = vxpose.xlu0.b32.cont [15/16] 0.0, 128
  %67 = vxpose.xlu0.b32.end [16/16] 0.0, 128
  %v68 = vpop.trf.xlu0
  %v69 = vpop.trf.xlu0
  %v70 = vpop.trf.xlu0
  %v71 = vpop.trf.xlu0
  %v72 = vpop.trf.xlu0
  %v73 = vpop.trf.xlu0
  %v74 = vpop.trf.xlu0
  %v75 = vpop.trf.xlu0
  %v76 = vpop.trf.xlu0
  %v77 = vpop.trf.xlu0
  %v78 = vpop.trf.xlu0
  %v79 = vpop.trf.xlu0
  %v80 = vpop.trf.xlu0
  %v81 = vpop.trf.xlu0
  %v82 = vpop.trf.xlu0
  %v83 = vpop.trf.xlu0
  %vm84 = vcmask 31744
  %v85 = vsel %vm84, %v34, 0.0
  %v86 = vsel %vm84, %v35, 0.0
  %v87 = vadd.f32 %v85, %v86
  %v88 = vsel %vm84, %v36, 0.0
  %v89 = vadd.f32 %v87, %v88
  %v90 = vsel %vm84, %v37, 0.0
  %v91 = vadd.f32 %v89, %v90
  %v92 = vsel %vm84, %v38, 0.0
  %v93 = vadd.f32 %v91, %v92
  %v94 = vsel %vm84, %v39, 0.0
  %v95 = vadd.f32 %v93, %v94
  %v96 = vsel %vm84, %v40, 0.0
  %v97 = vadd.f32 %v95, %v96
  %v98 = vsel %vm84, %v41, 0.0
  %v99 = vadd.f32 %v97, %v98
  %v100 = vsel %vm84, %v68, 0.0
  %v101 = vadd.f32 %v99, %v100
  %v102 = vsel %vm84, %v69, 0.0
  %v103 = vadd.f32 %v101, %v102
  %v104 = vsel %vm84, %v70, 0.0
  %v105 = vadd.f32 %v103, %v104
  %v106 = vsel %vm84, %v71, 0.0
  %v107 = vadd.f32 %v105, %v106
  %v108 = vsel %vm84, %v72, 0.0
  %v109 = vadd.f32 %v107, %v108
  %v110 = vsel %vm84, %v73, 0.0
  %v111 = vadd.f32 %v109, %v110
  %v112 = vsel %vm84, %v74, 0.0
  %v113 = vadd.f32 %v111, %v112
  %v114 = vsel %vm84, %v75, 0.0
  %v115 = vadd.f32 %v113, %v114
  %v116 = vrot.slane %v115, 4
  %v117 = vadd.f32 %v115, %v116
  %v118 = vrot.slane %v117, 2
  %v119 = vadd.f32 %v117, %v118
  %v120 = vrot.slane %v119, 1
  %v121 = vadd.f32 %v119, %v120
  %v122 = vrcp.pop 128.0
  %v123 = vmul.f32 %v121, %v122
  %v124 = vsub.f32 %v34, %v123
  %v125 = vsub.f32 %v35, %v123
  %v126 = vsub.f32 %v36, %v123
  %v127 = vsub.f32 %v37, %v123
  %v128 = vsub.f32 %v38, %v123
  %v129 = vsub.f32 %v39, %v123
  %v130 = vsub.f32 %v40, %v123
  %v131 = vsub.f32 %v41, %v123
  %v132 = vsub.f32 %v68, %v123
  %v133 = vsub.f32 %v69, %v123
  %v134 = vsub.f32 %v70, %v123
  %v135 = vsub.f32 %v71, %v123
  %v136 = vsub.f32 %v72, %v123
  %v137 = vsub.f32 %v73, %v123
  %v138 = vsub.f32 %v74, %v123
  %v139 = vsub.f32 %v75, %v123
  %v140 = vmul.f32 %v124, %v124
  %v141 = vmul.f32 %v125, %v125
  %v142 = vmul.f32 %v126, %v126
  %v143 = vmul.f32 %v127, %v127
  %v144 = vmul.f32 %v128, %v128
  %v145 = vmul.f32 %v129, %v129
  %v146 = vmul.f32 %v130, %v130
  %v147 = vmul.f32 %v131, %v131
  %v148 = vmul.f32 %v132, %v132
  %v149 = vmul.f32 %v133, %v133
  %v150 = vmul.f32 %v134, %v134
  %v151 = vmul.f32 %v135, %v135
  %v152 = vmul.f32 %v136, %v136
  %v153 = vmul.f32 %v137, %v137
  %v154 = vmul.f32 %v138, %v138
  %v155 = vmul.f32 %v139, %v139
  %v156 = vsel %vm84, %v140, 0.0
  %v157 = vsel %vm84, %v141, 0.0
  %v158 = vadd.f32 %v156, %v157
  %v159 = vsel %vm84, %v142, 0.0
  %v160 = vadd.f32 %v158, %v159
  %v161 = vsel %vm84, %v143, 0.0
  %v162 = vadd.f32 %v160, %v161
  %v163 = vsel %vm84, %v144, 0.0
  %v164 = vadd.f32 %v162, %v163
  %v165 = vsel %vm84, %v145, 0.0
  %v166 = vadd.f32 %v164, %v165
  %v167 = vsel %vm84, %v146, 0.0
  %v168 = vadd.f32 %v166, %v167
  %v169 = vsel %vm84, %v147, 0.0
  %v170 = vadd.f32 %v168, %v169
  %v171 = vsel %vm84, %v148, 0.0
  %v172 = vadd.f32 %v170, %v171
  %v173 = vsel %vm84, %v149, 0.0
  %v174 = vadd.f32 %v172, %v173
  %v175 = vsel %vm84, %v150, 0.0
  %v176 = vadd.f32 %v174, %v175
  %v177 = vsel %vm84, %v151, 0.0
  %v178 = vadd.f32 %v176, %v177
  %v179 = vsel %vm84, %v152, 0.0
  %v180 = vadd.f32 %v178, %v179
  %v181 = vsel %vm84, %v153, 0.0
  %v182 = vadd.f32 %v180, %v181
  %v183 = vsel %vm84, %v154, 0.0
  %v184 = vadd.f32 %v182, %v183
  %v185 = vsel %vm84, %v155, 0.0
  %v186 = vadd.f32 %v184, %v185
  %v187 = vrot.slane %v186, 4
  %v188 = vadd.f32 %v186, %v187
  %v189 = vrot.slane %v188, 2
  %v190 = vadd.f32 %v188, %v189
  %v191 = vrot.slane %v190, 1
  %v192 = vadd.f32 %v190, %v191
  %v193 = vmul.f32 %v192, %v122
  %v194 = vadd.f32 %v193, 1e-05
  %v195 = vrsqrt.pop %v194
  %v196 = vmul.f32 %v124, %v195
  %v197 = vmul.f32 %v125, %v195
  %v198 = vmul.f32 %v126, %v195
  %v199 = vmul.f32 %v127, %v195
  %v200 = vmul.f32 %v128, %v195
  %v201 = vmul.f32 %v129, %v195
  %v202 = vmul.f32 %v130, %v195
  %v203 = vmul.f32 %v131, %v195
  %v204 = vmul.f32 %v132, %v195
  %v205 = vmul.f32 %v133, %v195
  %v206 = vmul.f32 %v134, %v195
  %v207 = vmul.f32 %v135, %v195
  %v208 = vmul.f32 %v136, %v195
  %v209 = vmul.f32 %v137, %v195
  %v210 = vmul.f32 %v138, %v195
  %v211 = vmul.f32 %v139, %v195
  %212 = vst.msk [vmem:[#allocation2] sm:$0xff] %vm84, %v196
  %213 = vst.msk [vmem:[#allocation2 + $0x8] sm:$0xff] %vm84, %v197
  %214 = vst.msk [vmem:[#allocation2 + $0x10] sm:$0xff] %vm84, %v198
  %215 = vst.msk [vmem:[#allocation2 + $0x18] sm:$0xff] %vm84, %v199
  %216 = vst.msk [vmem:[#allocation2 + $0x20] sm:$0xff] %vm84, %v200
  %217 = vst.msk [vmem:[#allocation2 + $0x28] sm:$0xff] %vm84, %v201
  %218 = vst.msk [vmem:[#allocation2 + $0x30] sm:$0xff] %vm84, %v202
  %219 = vst.msk [vmem:[#allocation2 + $0x38] sm:$0xff] %vm84, %v203
  %220 = vst.msk [vmem:[#allocation2 + $0x40] sm:$0xff] %vm84, %v204
  %221 = vst.msk [vmem:[#allocation2 + $0x48] sm:$0xff] %vm84, %v205
  %222 = vst.msk [vmem:[#allocation2 + $0x50] sm:$0xff] %vm84, %v206
  %223 = vst.msk [vmem:[#allocation2 + $0x58] sm:$0xff] %vm84, %v207
  %224 = vst.msk [vmem:[#allocation2 + $0x60] sm:$0xff] %vm84, %v208
  %225 = vst.msk [vmem:[#allocation2 + $0x68] sm:$0xff] %vm84, %v209
  %226 = vst.msk [vmem:[#allocation2 + $0x70] sm:$0xff] %vm84, %v210
  %227 = vst.msk [vmem:[#allocation2 + $0x78] sm:$0xff] %vm84, %v211
  %v228 = vld [vmem:[#allocation2] ss:$2 sm:$0xff]
  %s229 = scalar_lea.vmem [#allocation2], 16
  %v230 = vld [vmem:[%s229] ss:$2 sm:$0xff]
  %s231 = scalar_lea.vmem [#allocation2], 32
  %v232 = vld [vmem:[%s231] ss:$2 sm:$0xff]
  %s233 = scalar_lea.vmem [#allocation2], 48
  %v234 = vld [vmem:[%s233] ss:$2 sm:$0x7f]
  %s235 = scalar_lea.vmem [#allocation2], 1
  %v236 = vld [vmem:[%s235] ss:$2 sm:$0xff]
  %s237 = scalar_lea.vmem [#allocation2], 17
  %v238 = vld [vmem:[%s237] ss:$2 sm:$0xff]
  %s239 = scalar_lea.vmem [#allocation2], 33
  %v240 = vld [vmem:[%s239] ss:$2 sm:$0xff]
  %s241 = scalar_lea.vmem [#allocation2], 49
  %v242 = vld [vmem:[%s241] ss:$2 sm:$0x7f]
  %s243 = scalar_lea.vmem [#allocation2], 2
  %v244 = vld [vmem:[%s243] ss:$2 sm:$0xff]
  %s245 = scalar_lea.vmem [#allocation2], 18
  %v246 = vld [vmem:[%s245] ss:$2 sm:$0xff]
  %s247 = scalar_lea.vmem [#allocation2], 34
  %v248 = vld [vmem:[%s247] ss:$2 sm:$0xff]
  %s249 = scalar_lea.vmem [#allocation2], 50
  %v250 = vld [vmem:[%s249] ss:$2 sm:$0x7f]
  %s251 = scalar_lea.vmem [#allocation2], 3
  %v252 = vld [vmem:[%s251] ss:$2 sm:$0xff]
  %s253 = scalar_lea.vmem [#allocation2], 19
  %v254 = vld [vmem:[%s253] ss:$2 sm:$0xff]
  %s255 = scalar_lea.vmem [#allocation2], 35
  %v256 = vld [vmem:[%s255] ss:$2 sm:$0xff]
  %s257 = scalar_lea.vmem [#allocation2], 51
  %v258 = vld [vmem:[%s257] ss:$2 sm:$0x7f]
  %263 = vrot.lane.b32.xlu0 %v236, 4
  %v264 = vpop.permute.xlu0 %263
  %265 = vrot.lane.b32.xlu0 %v238, 4
  %v266 = vpop.permute.xlu0 %265
  %267 = vrot.lane.b32.xlu0 %v240, 4
  %v268 = vpop.permute.xlu0 %267
  %269 = vrot.lane.b32.xlu0 %v242, 4
  %v270 = vpop.permute.xlu0 %269
  %279 = vrot.lane.b32.xlu0 %v244, 8
  %v280 = vpop.permute.xlu0 %279
  %281 = vrot.lane.b32.xlu0 %v246, 8
  %v282 = vpop.permute.xlu0 %281
  %283 = vrot.lane.b32.xlu0 %v248, 8
  %v284 = vpop.permute.xlu0 %283
  %285 = vrot.lane.b32.xlu0 %v250, 8
  %v286 = vpop.permute.xlu0 %285
  %295 = vrot.lane.b32.xlu0 %v252, 12
  %v296 = vpop.permute.xlu0 %295
  %297 = vrot.lane.b32.xlu0 %v254, 12
  %v298 = vpop.permute.xlu0 %297
  %299 = vrot.lane.b32.xlu0 %v256, 12
  %v300 = vpop.permute.xlu0 %299
  %301 = vrot.lane.b32.xlu0 %v258, 12
  %v302 = vpop.permute.xlu0 %301
  %v307 = vsel %vm84, %v228, %v264
  %v308 = vsel %vm84, %v230, %v266
  %v309 = vsel %vm84, %v232, %v268
  %v310 = vsel %vm84, %v234, %v270
  %vm311 = vcmask 64512
  %v312 = vsel %vm311, %v307, %v280
  %v313 = vsel %vm311, %v308, %v282
  %v314 = vsel %vm311, %v309, %v284
  %v315 = vsel %vm311, %v310, %v286
  %vm316 = vcmask 97280
  %v317 = vsel %vm316, %v312, %v296
  %v318 = vsel %vm316, %v313, %v298
  %v319 = vsel %vm316, %v314, %v300
  %v320 = vsel %vm316, %v315, %v302
  %s321 = scalar_lea.vmem [#allocation2], 64
  %v322 = vld [vmem:[%s321] ss:$2 sm:$0xff]
  %s323 = scalar_lea.vmem [#allocation2], 80
  %v324 = vld [vmem:[%s323] ss:$2 sm:$0xff]
  %s325 = scalar_lea.vmem [#allocation2], 96
  %v326 = vld [vmem:[%s325] ss:$2 sm:$0xff]
  %s327 = scalar_lea.vmem [#allocation2], 112
  %v328 = vld [vmem:[%s327] ss:$2 sm:$0x7f]
  %s329 = scalar_lea.vmem [#allocation2], 65
  %v330 = vld [vmem:[%s329] ss:$2 sm:$0xff]
  %s331 = scalar_lea.vmem [#allocation2], 81
  %v332 = vld [vmem:[%s331] ss:$2 sm:$0xff]
  %s333 = scalar_lea.vmem [#allocation2], 97
  %v334 = vld [vmem:[%s333] ss:$2 sm:$0xff]
  %s335 = scalar_lea.vmem [#allocation2], 113
  %v336 = vld [vmem:[%s335] ss:$2 sm:$0x7f]
  %s337 = scalar_lea.vmem [#allocation2], 66
  %v338 = vld [vmem:[%s337] ss:$2 sm:$0xff]
  %s339 = scalar_lea.vmem [#allocation2], 82
  %v340 = vld [vmem:[%s339] ss:$2 sm:$0xff]
  %s341 = scalar_lea.vmem [#allocation2], 98
  %v342 = vld [vmem:[%s341] ss:$2 sm:$0xff]
  %s343 = scalar_lea.vmem [#allocation2], 114
  %v344 = vld [vmem:[%s343] ss:$2 sm:$0x7f]
  %s345 = scalar_lea.vmem [#allocation2], 67
  %v346 = vld [vmem:[%s345] ss:$2 sm:$0xff]
  %s347 = scalar_lea.vmem [#allocation2], 83
  %v348 = vld [vmem:[%s347] ss:$2 sm:$0xff]
  %s349 = scalar_lea.vmem [#allocation2], 99
  %v350 = vld [vmem:[%s349] ss:$2 sm:$0xff]
  %s351 = scalar_lea.vmem [#allocation2], 115
  %v352 = vld [vmem:[%s351] ss:$2 sm:$0x7f]
  %357 = vrot.lane.b32.xlu0 %v330, 4
  %v358 = vpop.permute.xlu0 %357
  %359 = vrot.lane.b32.xlu0 %v332, 4
  %v360 = vpop.permute.xlu0 %359
  %361 = vrot.lane.b32.xlu0 %v334, 4
  %v362 = vpop.permute.xlu0 %361
  %363 = vrot.lane.b32.xlu0 %v336, 4
  %v364 = vpop.permute.xlu0 %363
  %373 = vrot.lane.b32.xlu0 %v338, 8
  %v374 = vpop.permute.xlu0 %373
  %375 = vrot.lane.b32.xlu0 %v340, 8
  %v376 = vpop.permute.xlu0 %375
  %377 = vrot.lane.b32.xlu0 %v342, 8
  %v378 = vpop.permute.xlu0 %377
  %379 = vrot.lane.b32.xlu0 %v344, 8
  %v380 = vpop.permute.xlu0 %379
  %389 = vrot.lane.b32.xlu0 %v346, 12
  %v390 = vpop.permute.xlu0 %389
  %391 = vrot.lane.b32.xlu0 %v348, 12
  %v392 = vpop.permute.xlu0 %391
  %393 = vrot.lane.b32.xlu0 %v350, 12
  %v394 = vpop.permute.xlu0 %393
  %395 = vrot.lane.b32.xlu0 %v352, 12
  %v396 = vpop.permute.xlu0 %395
  %v401 = vsel %vm84, %v322, %v358
  %v402 = vsel %vm84, %v324, %v360
  %v403 = vsel %vm84, %v326, %v362
  %v404 = vsel %vm84, %v328, %v364
  %v405 = vsel %vm311, %v401, %v374
  %v406 = vsel %vm311, %v402, %v376
  %v407 = vsel %vm311, %v403, %v378
  %v408 = vsel %vm311, %v404, %v380
  %v409 = vsel %vm316, %v405, %v390
  %v410 = vsel %vm316, %v406, %v392
  %v411 = vsel %vm316, %v407, %v394
  %v412 = vsel %vm316, %v408, %v396
  %vm417 = vcmask 1046528
  %v418 = vrot.slane %v409, 1
  %v419 = vrot.slane %v410, 1
  %v420 = vsel %vm417, %v418, %v419
  %v421 = vrot.slane %v411, 1
  %v422 = vsel %vm417, %v419, %v421
  %v423 = vrot.slane %v412, 1
  %v424 = vsel %vm417, %v421, %v423
  %v426 = vsel %vm417, %v320, %v418
  %v427 = vld [vmem:[%s1] sm:$0xff]
  %v428 = vld [vmem:[%s1 + $0x8] sm:$0xff]
  %vm429 = vcmask 130048
  %v431 = vsel %vm429, %v317, 0
  %v434 = vsel %vm429, %v318, 0
  %v437 = vsel %vm429, %v319, 0
  %v440 = vsel %vm429, %v426, 0
  %v442 = vsel %vm429, %v420, 0
  %v444 = vsel %vm429, %v422, 0
  %v446 = vsel %vm429, %v424, 0
  %v448 = vsel %vm429, %v423, 0
  %450 = vmatprep.subr.mxu0 0.0
  %451 = vmatpush1.msra.mxu0 0.0
  %452 = vmatprep.subr.mxu0 0.0
  %453 = vmatpush1.msra.mxu0 0.0
  %454 = vmatprep.subr.mxu0 0.0
  %455 = vmatpush1.msra.mxu0 0.0
  %456 = vmatprep.subr.mxu0 0.0
  %457 = vmatpush1.msra.mxu0 0.0
  %458 = vmatprep.subr.mxu0 0.0
  %459 = vmatpush1.msra.mxu0 0.0
  %460 = vmatprep.subr.mxu0 0.0
  %461 = vmatpush1.msra.mxu0 0.0
  %462 = vmatprep.subr.mxu0 0.0
  %463 = vmatpush1.msra.mxu0 0.0
  %464 = vmatprep.subr.mxu0 0.0
  %465 = vmatpush1.msra.mxu0 0.0
  %466 = vmatprep.subr.mxu0 0.0
  %467 = vmatpush1.msra.mxu0 0.0
  %468 = vmatprep.subr.mxu0 0.0
  %469 = vmatpush1.msra.mxu0 0.0
  %470 = vmatprep.subr.mxu0 0.0
  %471 = vmatpush1.msra.mxu0 0.0
  %472 = vmatprep.subr.mxu0 0.0
  %473 = vmatpush1.msra.mxu0 0.0
  %474 = vmatprep.subr.mxu0 0.0
  %475 = vmatpush1.msra.mxu0 0.0
  %476 = vmatprep.subr.mxu0 0.0
  %477 = vmatpush1.msra.mxu0 0.0
  %478 = vmatprep.subr.mxu0 0.0
  %479 = vmatpush1.msra.mxu0 %v428
  %480 = vmatprep.subr.mxu0 0.0
  %481 = vmatpush1.msra.mxu0 %v427
  %482 = vmatprep.subr.mxu0 0.0
  %483 = vmatpush2.msra.mxu0 0.0
  %484 = vmatprep.subr.mxu0 0.0
  %485 = vmatpush2.msra.mxu0 0.0
  %486 = vmatprep.subr.mxu0 0.0
  %487 = vmatpush2.msra.mxu0 0.0
  %488 = vmatprep.subr.mxu0 0.0
  %489 = vmatpush2.msra.mxu0 0.0
  %490 = vmatprep.subr.mxu0 0.0
  %491 = vmatpush2.msra.mxu0 0.0
  %492 = vmatprep.subr.mxu0 0.0
  %493 = vmatpush2.msra.mxu0 0.0
  %494 = vmatprep.subr.mxu0 0.0
  %495 = vmatpush2.msra.mxu0 0.0
  %496 = vmatprep.subr.mxu0 0.0
  %497 = vmatpush2.msra.mxu0 0.0
  %498 = vmatprep.subr.mxu0 0.0
  %499 = vmatpush2.msra.mxu0 0.0
  %500 = vmatprep.subr.mxu0 0.0
  %501 = vmatpush2.msra.mxu0 0.0
  %502 = vmatprep.subr.mxu0 0.0
  %503 = vmatpush2.msra.mxu0 0.0
  %504 = vmatprep.subr.mxu0 0.0
  %505 = vmatpush2.msra.mxu0 0.0
  %506 = vmatprep.subr.mxu0 0.0
  %507 = vmatpush2.msra.mxu0 0.0
  %508 = vmatprep.subr.mxu0 0.0
  %509 = vmatpush2.msra.mxu0 0.0
  %510 = vmatprep.subr.mxu0 0.0
  %511 = vmatpush2.msra.mxu0 0.0
  %512 = vmatprep.subr.mxu0 0.0
  %513 = vmatpush2.msra.mxu0 0.0
  %514 = vmatprep.mubr.f32.mxu0 0.0
  %515 = vmatmul.mubr.f32.gmra.mxu0 %v431
  %v516 = vpop.f32.mrf.mxu0
  %v517 = vadd.f32 0.0, %v516
  %v518 = vpop.f32.mrf.mxu0
  %519 = vmatprep.mubr.f32.mxu0 0.0
  %520 = vmatmul.mubr.f32.gmra.mxu0 %v434
  %v521 = vpop.f32.mrf.mxu0
  %v522 = vadd.f32 0.0, %v521
  %v523 = vpop.f32.mrf.mxu0
  %524 = vmatprep.mubr.f32.mxu0 0.0
  %525 = vmatmul.mubr.f32.gmra.mxu0 %v437
  %v526 = vpop.f32.mrf.mxu0
  %v527 = vadd.f32 0.0, %v526
  %v528 = vpop.f32.mrf.mxu0
  %529 = vmatprep.mubr.f32.mxu0 0.0
  %530 = vmatmul.mubr.f32.gmra.mxu0 %v440
  %v531 = vpop.f32.mrf.mxu0
  %v532 = vadd.f32 0.0, %v531
  %v533 = vpop.f32.mrf.mxu0
  %534 = vmatprep.mubr.f32.mxu0 0.0
  %535 = vmatmul.mubr.f32.gmra.mxu0 %v442
  %v536 = vpop.f32.mrf.mxu0
  %v537 = vadd.f32 0.0, %v536
  %v538 = vpop.f32.mrf.mxu0
  %539 = vmatprep.mubr.f32.mxu0 0.0
  %540 = vmatmul.mubr.f32.gmra.mxu0 %v444
  %v541 = vpop.f32.mrf.mxu0
  %v542 = vadd.f32 0.0, %v541
  %v543 = vpop.f32.mrf.mxu0
  %544 = vmatprep.mubr.f32.mxu0 0.0
  %545 = vmatmul.mubr.f32.gmra.mxu0 %v446
  %v546 = vpop.f32.mrf.mxu0
  %v547 = vadd.f32 0.0, %v546
  %v548 = vpop.f32.mrf.mxu0
  %549 = vmatprep.mubr.f32.mxu0 0.0
  %550 = vmatmul.mubr.f32.gmra.mxu0 %v448
  %v551 = vpop.f32.mrf.mxu0
  %v552 = vadd.f32 0.0, %v551
  %v553 = vpop.f32.mrf.mxu0
  %554 = vdwg.mxu0
  %v555 = vsel %vm311, %v517, 0.0
  %v556 = vsel %vm311, %v522, 0.0
  %v557 = vadd.f32 %v555, %v556
  %v558 = vsel %vm311, %v527, 0.0
  %v559 = vadd.f32 %v557, %v558
  %v560 = vsel %vm311, %v532, 0.0
  %v561 = vadd.f32 %v559, %v560
  %v562 = vsel %vm311, %v537, 0.0
  %v563 = vadd.f32 %v561, %v562
  %v564 = vsel %vm311, %v542, 0.0
  %v565 = vadd.f32 %v563, %v564
  %v566 = vsel %vm311, %v547, 0.0
  %v567 = vadd.f32 %v565, %v566
  %vm568 = vcmask 62464
  %v569 = vsel %vm568, %v552, 0.0
  %v570 = vadd.f32 %v567, %v569
  %v571 = vrot.slane %v570, 4
  %v572 = vadd.f32 %v570, %v571
  %v573 = vrot.slane %v572, 2
  %v574 = vadd.f32 %v572, %v573
  %v575 = vrot.slane %v574, 1
  %v576 = vadd.f32 %v574, %v575
  %v577 = vrcp.pop 62.0
  %v578 = vmul.f32 %v576, %v577
  %v579 = vsub.f32 %v517, %v578
  %v580 = vsub.f32 %v522, %v578
  %v581 = vsub.f32 %v527, %v578
  %v582 = vsub.f32 %v532, %v578
  %v583 = vsub.f32 %v537, %v578
  %v584 = vsub.f32 %v542, %v578
  %v585 = vsub.f32 %v547, %v578
  %v586 = vsub.f32 %v552, %v578
  %v587 = vmul.f32 %v579, %v579
  %v588 = vmul.f32 %v580, %v580
  %v589 = vmul.f32 %v581, %v581
  %v590 = vmul.f32 %v582, %v582
  %v591 = vmul.f32 %v583, %v583
  %v592 = vmul.f32 %v584, %v584
  %v593 = vmul.f32 %v585, %v585
  %v594 = vmul.f32 %v586, %v586
  %v595 = vsel %vm311, %v587, 0.0
  %v596 = vsel %vm311, %v588, 0.0
  %v597 = vadd.f32 %v595, %v596
  %v598 = vsel %vm311, %v589, 0.0
  %v599 = vadd.f32 %v597, %v598
  %v600 = vsel %vm311, %v590, 0.0
  %v601 = vadd.f32 %v599, %v600
  %v602 = vsel %vm311, %v591, 0.0
  %v603 = vadd.f32 %v601, %v602
  %v604 = vsel %vm311, %v592, 0.0
  %v605 = vadd.f32 %v603, %v604
  %v606 = vsel %vm311, %v593, 0.0
  %v607 = vadd.f32 %v605, %v606
  %v608 = vsel %vm568, %v594, 0.0
  %v609 = vadd.f32 %v607, %v608
  %v610 = vrot.slane %v609, 4
  %v611 = vadd.f32 %v609, %v610
  %v612 = vrot.slane %v611, 2
  %v613 = vadd.f32 %v611, %v612
  %v614 = vrot.slane %v613, 1
  %v615 = vadd.f32 %v613, %v614
  %v616 = vmul.f32 %v615, %v577
  %v617 = vadd.f32 %v616, 1e-05
  %v618 = vrsqrt.pop %v617
  %v619 = vmul.f32 %v579, %v618
  %v620 = vmul.f32 %v580, %v618
  %v621 = vmul.f32 %v581, %v618
  %v622 = vmul.f32 %v582, %v618
  %v623 = vmul.f32 %v583, %v618
  %v624 = vmul.f32 %v584, %v618
  %v625 = vmul.f32 %v585, %v618
  %v626 = vmul.f32 %v586, %v618
  %v627 = vmax.f32 %v619, 0.0
  %v628 = vmax.f32 %v620, 0.0
  %v629 = vmax.f32 %v621, 0.0
  %v630 = vmax.f32 %v622, 0.0
  %v631 = vmax.f32 %v623, 0.0
  %v632 = vmax.f32 %v624, 0.0
  %v633 = vmax.f32 %v625, 0.0
  %v634 = vmax.f32 %v626, 0.0
  %635 = vst.msk [vmem:[#allocation3] sm:$0xff] %vm311, %v627
  %636 = vst.msk [vmem:[#allocation3 + $0x8] sm:$0xff] %vm311, %v628
  %637 = vst.msk [vmem:[#allocation3 + $0x10] sm:$0xff] %vm311, %v629
  %vm638 = vcmask 63488
  %639 = vst.msk [vmem:[#allocation3 + $0x18] sm:$0x7f] %vm638, %v630
  %vm640 = vcmask 64519
  %641 = vst.msk [vmem:[#allocation3 + $0x19] sm:$0x80] %vm640, %v630
  %642 = vst.msk [vmem:[#allocation3 + $0x21] sm:$0xff] %vm311, %v631
  %643 = vst.msk [vmem:[#allocation3 + $0x29] sm:$0xff] %vm311, %v632
  %644 = vst.msk [vmem:[#allocation3 + $0x31] sm:$0xff] %vm311, %v633
  %645 = vst.msk [vmem:[#allocation3 + $0x39] sm:$0x3f] %vm568, %v634
  %v646 = vld [vmem:[#allocation3] ss:$2 sm:$0xff]
  %s647 = scalar_lea.vmem [#allocation3], 16
  %v648 = vld [vmem:[%s647] ss:$2 sm:$0x3f]
  %s649 = scalar_lea.vmem [#allocation3], 1
  %v650 = vld [vmem:[%s649] ss:$2 sm:$0xff]
  %s651 = scalar_lea.vmem [#allocation3], 17
  %v652 = vld [vmem:[%s651] ss:$2 sm:$0x3f]
  %s653 = scalar_lea.vmem [#allocation3], 2
  %v654 = vld [vmem:[%s653] ss:$2 sm:$0xff]
  %s655 = scalar_lea.vmem [#allocation3], 18
  %v656 = vld [vmem:[%s655] ss:$2 sm:$0x3f]
  %s657 = scalar_lea.vmem [#allocation3], 3
  %v658 = vld [vmem:[%s657] ss:$2 sm:$0xff]
  %s659 = scalar_lea.vmem [#allocation3], 19
  %v660 = vld [vmem:[%s659] ss:$2 sm:$0x3f]
  %663 = vrot.lane.b32.xlu0 %v650, 8
  %v664 = vpop.permute.xlu0 %663
  %665 = vrot.lane.b32.xlu0 %v652, 8
  %v666 = vpop.permute.xlu0 %665
  %671 = vrot.lane.b32.xlu0 %v654, 16
  %v672 = vpop.permute.xlu0 %671
  %673 = vrot.lane.b32.xlu0 %v656, 16
  %v674 = vpop.permute.xlu0 %673
  %679 = vrot.lane.b32.xlu0 %v658, 24
  %v680 = vpop.permute.xlu0 %679
  %681 = vrot.lane.b32.xlu0 %v660, 24
  %v682 = vpop.permute.xlu0 %681
  %v685 = vsel %vm311, %v646, %v664
  %v686 = vsel %vm311, %v648, %v666
  %v687 = vsel %vm429, %v685, %v672
  %v688 = vsel %vm429, %v686, %v674
  %vm689 = vcmask 195584
  %v690 = vsel %vm689, %v687, %v680
  %v691 = vsel %vm689, %v688, %v682
  %s692 = scalar_lea.vmem [#allocation3], 32
  %v693 = vld [vmem:[%s692] ss:$2 sm:$0xff]
  %s694 = scalar_lea.vmem [#allocation3], 48
  %v695 = vld [vmem:[%s694] ss:$2 sm:$0x3f]
  %s696 = scalar_lea.vmem [#allocation3], 33
  %v697 = vld [vmem:[%s696] ss:$2 sm:$0xff]
  %s698 = scalar_lea.vmem [#allocation3], 49
  %v699 = vld [vmem:[%s698] ss:$2 sm:$0x3f]
  %s700 = scalar_lea.vmem [#allocation3], 34
  %v701 = vld [vmem:[%s700] ss:$2 sm:$0xff]
  %s702 = scalar_lea.vmem [#allocation3], 50
  %v703 = vld [vmem:[%s702] ss:$2 sm:$0x3f]
  %s704 = scalar_lea.vmem [#allocation3], 35
  %v705 = vld [vmem:[%s704] ss:$2 sm:$0xff]
  %s706 = scalar_lea.vmem [#allocation3], 51
  %v707 = vld [vmem:[%s706] ss:$2 sm:$0x3f]
  %710 = vrot.lane.b32.xlu0 %v697, 8
  %v711 = vpop.permute.xlu0 %710
  %712 = vrot.lane.b32.xlu0 %v699, 8
  %v713 = vpop.permute.xlu0 %712
  %718 = vrot.lane.b32.xlu0 %v701, 16
  %v719 = vpop.permute.xlu0 %718
  %720 = vrot.lane.b32.xlu0 %v703, 16
  %v721 = vpop.permute.xlu0 %720
  %726 = vrot.lane.b32.xlu0 %v705, 24
  %v727 = vpop.permute.xlu0 %726
  %728 = vrot.lane.b32.xlu0 %v707, 24
  %v729 = vpop.permute.xlu0 %728
  %v732 = vsel %vm311, %v693, %v711
  %v733 = vsel %vm311, %v695, %v713
  %v734 = vsel %vm429, %v732, %v719
  %v735 = vsel %vm429, %v733, %v721
  %v736 = vsel %vm689, %v734, %v727
  %v737 = vsel %vm689, %v735, %v729
  %vm740 = vcmask 1045504
  %v741 = vrot.slane %v736, 2
  %v742 = vrot.slane %v737, 2
  %v743 = vsel %vm740, %v741, %v742
  %v745 = vsel %vm740, %v691, %v741
  %v746 = vld [vmem:[%s2] sm:$0xff]
  %v747 = vld [vmem:[%s2 + $0x8] sm:$0xff]
  %v748 = vld [vmem:[%s2 + $0x10] sm:$0xff]
  %v749 = vld [vmem:[%s2 + $0x18] sm:$0xff]
  %vm750 = vcmask 261120
  %v752 = vsel %vm750, %v690, 0
  %v755 = vsel %vm750, %v745, 0
  %v757 = vsel %vm750, %v743, 0
  %v759 = vsel %vm750, %v742, 0
  %761 = vmatprep.subr.mxu0 0.0
  %762 = vmatpush1.msra.mxu0 0.0
  %763 = vmatprep.subr.mxu0 0.0
  %764 = vmatpush1.msra.mxu0 0.0
  %765 = vmatprep.subr.mxu0 0.0
  %766 = vmatpush1.msra.mxu0 0.0
  %767 = vmatprep.subr.mxu0 0.0
  %768 = vmatpush1.msra.mxu0 0.0
  %769 = vmatprep.subr.mxu0 0.0
  %770 = vmatpush1.msra.mxu0 0.0
  %771 = vmatprep.subr.mxu0 0.0
  %772 = vmatpush1.msra.mxu0 0.0
  %773 = vmatprep.subr.mxu0 0.0
  %774 = vmatpush1.msra.mxu0 0.0
  %775 = vmatprep.subr.mxu0 0.0
  %776 = vmatpush1.msra.mxu0 0.0
  %777 = vmatprep.subr.mxu0 0.0
  %778 = vmatpush1.msra.mxu0 0.0
  %779 = vmatprep.subr.mxu0 0.0
  %780 = vmatpush1.msra.mxu0 0.0
  %781 = vmatprep.subr.mxu0 0.0
  %782 = vmatpush1.msra.mxu0 0.0
  %783 = vmatprep.subr.mxu0 0.0
  %784 = vmatpush1.msra.mxu0 0.0
  %785 = vmatprep.subr.mxu0 0.0
  %786 = vmatpush1.msra.mxu0 %v749
  %787 = vmatprep.subr.mxu0 0.0
  %788 = vmatpush1.msra.mxu0 %v748
  %789 = vmatprep.subr.mxu0 0.0
  %790 = vmatpush1.msra.mxu0 %v747
  %791 = vmatprep.subr.mxu0 0.0
  %792 = vmatpush1.msra.mxu0 %v746
  %793 = vmatprep.subr.mxu0 0.0
  %794 = vmatpush2.msra.mxu0 0.0
  %795 = vmatprep.subr.mxu0 0.0
  %796 = vmatpush2.msra.mxu0 0.0
  %797 = vmatprep.subr.mxu0 0.0
  %798 = vmatpush2.msra.mxu0 0.0
  %799 = vmatprep.subr.mxu0 0.0
  %800 = vmatpush2.msra.mxu0 0.0
  %801 = vmatprep.subr.mxu0 0.0
  %802 = vmatpush2.msra.mxu0 0.0
  %803 = vmatprep.subr.mxu0 0.0
  %804 = vmatpush2.msra.mxu0 0.0
  %805 = vmatprep.subr.mxu0 0.0
  %806 = vmatpush2.msra.mxu0 0.0
  %807 = vmatprep.subr.mxu0 0.0
  %808 = vmatpush2.msra.mxu0 0.0
  %809 = vmatprep.subr.mxu0 0.0
  %810 = vmatpush2.msra.mxu0 0.0
  %811 = vmatprep.subr.mxu0 0.0
  %812 = vmatpush2.msra.mxu0 0.0
  %813 = vmatprep.subr.mxu0 0.0
  %814 = vmatpush2.msra.mxu0 0.0
  %815 = vmatprep.subr.mxu0 0.0
  %816 = vmatpush2.msra.mxu0 0.0
  %817 = vmatprep.subr.mxu0 0.0
  %818 = vmatpush2.msra.mxu0 0.0
  %819 = vmatprep.subr.mxu0 0.0
  %820 = vmatpush2.msra.mxu0 0.0
  %821 = vmatprep.subr.mxu0 0.0
  %822 = vmatpush2.msra.mxu0 0.0
  %823 = vmatprep.subr.mxu0 0.0
  %824 = vmatpush2.msra.mxu0 0.0
  %825 = vmatprep.mubr.f32.mxu0 0.0
  %826 = vmatmul.mubr.f32.gmra.mxu0 %v752
  %v827 = vpop.f32.mrf.mxu0
  %v828 = vadd.f32 0.0, %v827
  %v829 = vpop.f32.mrf.mxu0
  %830 = vmatprep.mubr.f32.mxu0 0.0
  %831 = vmatmul.mubr.f32.gmra.mxu0 %v755
  %v832 = vpop.f32.mrf.mxu0
  %v833 = vadd.f32 0.0, %v832
  %v834 = vpop.f32.mrf.mxu0
  %835 = vmatprep.mubr.f32.mxu0 0.0
  %836 = vmatmul.mubr.f32.gmra.mxu0 %v757
  %v837 = vpop.f32.mrf.mxu0
  %v838 = vadd.f32 0.0, %v837
  %v839 = vpop.f32.mrf.mxu0
  %840 = vmatprep.mubr.f32.mxu0 0.0
  %841 = vmatmul.mubr.f32.gmra.mxu0 %v759
  %v842 = vpop.f32.mrf.mxu0
  %v843 = vadd.f32 0.0, %v842
  %v844 = vpop.f32.mrf.mxu0
  %845 = vdwg.mxu0
  %v846 = vsel %vm429, %v828, 0.0
  %v847 = vsel %vm429, %v833, 0.0
  %v848 = vadd.f32 %v846, %v847
  %v849 = vsel %vm429, %v838, 0.0
  %v850 = vadd.f32 %v848, %v849
  %vm851 = vcmask 125952
  %v852 = vsel %vm851, %v843, 0.0
  %v853 = vadd.f32 %v850, %v852
  %v854 = vrot.slane %v853, 4
  %v855 = vadd.f32 %v853, %v854
  %v856 = vrot.slane %v855, 2
  %v857 = vadd.f32 %v855, %v856
  %v858 = vrot.slane %v857, 1
  %v859 = vadd.f32 %v857, %v858
  %v860 = vrcp.pop 28.0
  %v861 = vmul.f32 %v859, %v860
  %v862 = vsub.f32 %v828, %v861
  %v863 = vsub.f32 %v833, %v861
  %v864 = vsub.f32 %v838, %v861
  %v865 = vsub.f32 %v843, %v861
  %v866 = vmul.f32 %v862, %v862
  %v867 = vmul.f32 %v863, %v863
  %v868 = vmul.f32 %v864, %v864
  %v869 = vmul.f32 %v865, %v865
  %v870 = vsel %vm429, %v866, 0.0
  %v871 = vsel %vm429, %v867, 0.0
  %v872 = vadd.f32 %v870, %v871
  %v873 = vsel %vm429, %v868, 0.0
  %v874 = vadd.f32 %v872, %v873
  %v875 = vsel %vm851, %v869, 0.0
  %v876 = vadd.f32 %v874, %v875
  %v877 = vrot.slane %v876, 4
  %v878 = vadd.f32 %v876, %v877
  %v879 = vrot.slane %v878, 2
  %v880 = vadd.f32 %v878, %v879
  %v881 = vrot.slane %v880, 1
  %v882 = vadd.f32 %v880, %v881
  %v883 = vmul.f32 %v882, %v860
  %v884 = vadd.f32 %v883, 1e-05
  %v885 = vrsqrt.pop %v884
  %v886 = vmul.f32 %v862, %v885
  %v887 = vmul.f32 %v863, %v885
  %v888 = vmul.f32 %v864, %v885
  %v889 = vmul.f32 %v865, %v885
  %v890 = vmax.f32 %v886, 0.0
  %v891 = vmax.f32 %v887, 0.0
  %v892 = vmax.f32 %v888, 0.0
  %v893 = vmax.f32 %v889, 0.0
  %894 = vst.msk [vmem:[#allocation4] sm:$0xff] %vm429, %v890
  %vm895 = vcmask 128000
  %896 = vst.msk [vmem:[#allocation4 + $0x8] sm:$0x3f] %vm895, %v891
  %vm897 = vcmask 130054
  %898 = vst.msk [vmem:[#allocation4 + $0xa] sm:$0xc0] %vm897, %v891
  %899 = vst.msk [vmem:[#allocation4 + $0x12] sm:$0xff] %vm429, %v892
  %900 = vst.msk [vmem:[#allocation4 + $0x1a] sm:$0xf] %vm851, %v893
  %v901 = vld [vmem:[#allocation4] sm:$0xff]
  %v902 = vld [vmem:[#allocation4 + $0x8] sm:$0x1f]
  %v903 = vld [vmem:[#allocation4 + $0x1] sm:$0xff]
  %v904 = vld [vmem:[#allocation4 + $0x9] sm:$0x1f]
  %907 = vrot.lane.b32.xlu0 %v903, 16
  %v908 = vpop.permute.xlu0 %907
  %909 = vrot.lane.b32.xlu0 %v904, 16
  %v910 = vpop.permute.xlu0 %909
  %v913 = vsel %vm429, %v901, %v908
  %v914 = vsel %vm429, %v902, %v910
  %v915 = vld [vmem:[#allocation4 + $0x10] sm:$0xff]
  %v916 = vld [vmem:[#allocation4 + $0x18] sm:$0x1f]
  %v917 = vld [vmem:[#allocation4 + $0x11] sm:$0xff]
  %v918 = vld [vmem:[#allocation4 + $0x19] sm:$0x1f]
  %921 = vrot.lane.b32.xlu0 %v917, 16
  %v922 = vpop.permute.xlu0 %921
  %923 = vrot.lane.b32.xlu0 %v918, 16
  %v924 = vpop.permute.xlu0 %923
  %v927 = vsel %vm429, %v915, %v922
  %v928 = vsel %vm429, %v916, %v924
  %vm931 = vcmask 1044480
  %v932 = vrot.slane %v927, 3
  %v933 = vrot.slane %v928, 3
  %v934 = vsel %vm931, %v932, %v933
  %v936 = vsel %vm931, %v914, %v932
  %v937 = vld [vmem:[%s3] sm:$0xff]
  %v938 = vld [vmem:[%s3 + $0x8] sm:$0xff]
  %v939 = vld [vmem:[%s3 + $0x10] sm:$0xff]
  %v940 = vld [vmem:[%s3 + $0x18] sm:$0xff]
  %v942 = vsel %vm750, %v913, 0
  %v945 = vsel %vm750, %v936, 0
  %v947 = vsel %vm750, %v934, 0
  %v949 = vsel %vm750, %v933, 0
  %951 = vmatprep.subr.mxu0 0.0
  %952 = vmatpush1.msra.mxu0 0.0
  %953 = vmatprep.subr.mxu0 0.0
  %954 = vmatpush1.msra.mxu0 0.0
  %955 = vmatprep.subr.mxu0 0.0
  %956 = vmatpush1.msra.mxu0 0.0
  %957 = vmatprep.subr.mxu0 0.0
  %958 = vmatpush1.msra.mxu0 0.0
  %959 = vmatprep.subr.mxu0 0.0
  %960 = vmatpush1.msra.mxu0 0.0
  %961 = vmatprep.subr.mxu0 0.0
  %962 = vmatpush1.msra.mxu0 0.0
  %963 = vmatprep.subr.mxu0 0.0
  %964 = vmatpush1.msra.mxu0 0.0
  %965 = vmatprep.subr.mxu0 0.0
  %966 = vmatpush1.msra.mxu0 0.0
  %967 = vmatprep.subr.mxu0 0.0
  %968 = vmatpush1.msra.mxu0 0.0
  %969 = vmatprep.subr.mxu0 0.0
  %970 = vmatpush1.msra.mxu0 0.0
  %971 = vmatprep.subr.mxu0 0.0
  %972 = vmatpush1.msra.mxu0 0.0
  %973 = vmatprep.subr.mxu0 0.0
  %974 = vmatpush1.msra.mxu0 0.0
  %975 = vmatprep.subr.mxu0 0.0
  %976 = vmatpush1.msra.mxu0 %v940
  %977 = vmatprep.subr.mxu0 0.0
  %978 = vmatpush1.msra.mxu0 %v939
  %979 = vmatprep.subr.mxu0 0.0
  %980 = vmatpush1.msra.mxu0 %v938
  %981 = vmatprep.subr.mxu0 0.0
  %982 = vmatpush1.msra.mxu0 %v937
  %983 = vmatprep.subr.mxu0 0.0
  %984 = vmatpush2.msra.mxu0 0.0
  %985 = vmatprep.subr.mxu0 0.0
  %986 = vmatpush2.msra.mxu0 0.0
  %987 = vmatprep.subr.mxu0 0.0
  %988 = vmatpush2.msra.mxu0 0.0
  %989 = vmatprep.subr.mxu0 0.0
  %990 = vmatpush2.msra.mxu0 0.0
  %991 = vmatprep.subr.mxu0 0.0
  %992 = vmatpush2.msra.mxu0 0.0
  %993 = vmatprep.subr.mxu0 0.0
  %994 = vmatpush2.msra.mxu0 0.0
  %995 = vmatprep.subr.mxu0 0.0
  %996 = vmatpush2.msra.mxu0 0.0
  %997 = vmatprep.subr.mxu0 0.0
  %998 = vmatpush2.msra.mxu0 0.0
  %999 = vmatprep.subr.mxu0 0.0
  %1000 = vmatpush2.msra.mxu0 0.0
  %1001 = vmatprep.subr.mxu0 0.0
  %1002 = vmatpush2.msra.mxu0 0.0
  %1003 = vmatprep.subr.mxu0 0.0
  %1004 = vmatpush2.msra.mxu0 0.0
  %1005 = vmatprep.subr.mxu0 0.0
  %1006 = vmatpush2.msra.mxu0 0.0
  %1007 = vmatprep.subr.mxu0 0.0
  %1008 = vmatpush2.msra.mxu0 0.0
  %1009 = vmatprep.subr.mxu0 0.0
  %1010 = vmatpush2.msra.mxu0 0.0
  %1011 = vmatprep.subr.mxu0 0.0
  %1012 = vmatpush2.msra.mxu0 0.0
  %1013 = vmatprep.subr.mxu0 0.0
  %1014 = vmatpush2.msra.mxu0 0.0
  %1015 = vmatprep.mubr.f32.mxu0 0.0
  %1016 = vmatmul.mubr.f32.gmra.mxu0 %v942
  %v1017 = vpop.f32.mrf.mxu0
  %v1018 = vadd.f32 0.0, %v1017
  %v1019 = vpop.f32.mrf.mxu0
  %1020 = vmatprep.mubr.f32.mxu0 0.0
  %1021 = vmatmul.mubr.f32.gmra.mxu0 %v945
  %v1022 = vpop.f32.mrf.mxu0
  %v1023 = vadd.f32 0.0, %v1022
  %v1024 = vpop.f32.mrf.mxu0
  %1025 = vmatprep.mubr.f32.mxu0 0.0
  %1026 = vmatmul.mubr.f32.gmra.mxu0 %v947
  %v1027 = vpop.f32.mrf.mxu0
  %v1028 = vadd.f32 0.0, %v1027
  %v1029 = vpop.f32.mrf.mxu0
  %1030 = vmatprep.mubr.f32.mxu0 0.0
  %1031 = vmatmul.mubr.f32.gmra.mxu0 %v949
  %v1032 = vpop.f32.mrf.mxu0
  %v1033 = vadd.f32 0.0, %v1032
  %v1034 = vpop.f32.mrf.mxu0
  %1035 = vdwg.mxu0
  %v1036 = vsel %vm750, %v1018, 0.0
  %v1037 = vsel %vm750, %v1023, 0.0
  %v1038 = vadd.f32 %v1036, %v1037
  %v1039 = vsel %vm750, %v1028, 0.0
  %v1040 = vadd.f32 %v1038, %v1039
  %vm1041 = vcmask 254976
  %v1042 = vsel %vm1041, %v1033, 0.0
  %v1043 = vadd.f32 %v1040, %v1042
  %v1044 = vrot.slane %v1043, 4
  %v1045 = vadd.f32 %v1043, %v1044
  %v1046 = vrot.slane %v1045, 2
  %v1047 = vadd.f32 %v1045, %v1046
  %v1048 = vrot.slane %v1047, 1
  %v1049 = vadd.f32 %v1047, %v1048
  %v1050 = vrcp.pop 26.0
  %v1051 = vmul.f32 %v1049, %v1050
  %v1052 = vsub.f32 %v1018, %v1051
  %v1053 = vsub.f32 %v1023, %v1051
  %v1054 = vsub.f32 %v1028, %v1051
  %v1055 = vsub.f32 %v1033, %v1051
  %v1056 = vmul.f32 %v1052, %v1052
  %v1057 = vmul.f32 %v1053, %v1053
  %v1058 = vmul.f32 %v1054, %v1054
  %v1059 = vmul.f32 %v1055, %v1055
  %v1060 = vsel %vm750, %v1056, 0.0
  %v1061 = vsel %vm750, %v1057, 0.0
  %v1062 = vadd.f32 %v1060, %v1061
  %v1063 = vsel %vm750, %v1058, 0.0
  %v1064 = vadd.f32 %v1062, %v1063
  %v1065 = vsel %vm1041, %v1059, 0.0
  %v1066 = vadd.f32 %v1064, %v1065
  %v1067 = vrot.slane %v1066, 4
  %v1068 = vadd.f32 %v1066, %v1067
  %v1069 = vrot.slane %v1068, 2
  %v1070 = vadd.f32 %v1068, %v1069
  %v1071 = vrot.slane %v1070, 1
  %v1072 = vadd.f32 %v1070, %v1071
  %v1073 = vmul.f32 %v1072, %v1050
  %v1074 = vadd.f32 %v1073, 1e-05
  %v1075 = vrsqrt.pop %v1074
  %v1076 = vmul.f32 %v1052, %v1075
  %v1077 = vmul.f32 %v1053, %v1075
  %v1078 = vmul.f32 %v1054, %v1075
  %v1079 = vmul.f32 %v1055, %v1075
  %v1080 = vmax.f32 %v1076, 0.0
  %v1081 = vmax.f32 %v1077, 0.0
  %v1082 = vmax.f32 %v1078, 0.0
  %v1083 = vmax.f32 %v1079, 0.0
  %1084 = vxpose.xlu0.b32.start [1/16] %v1080, 128
  %1085 = vxpose.xlu0.b32.cont [2/16] %v1081, 128
  %1086 = vxpose.xlu0.b32.cont [3/16] 0.0, 128
  %1087 = vxpose.xlu0.b32.cont [4/16] 0.0, 128
  %1088 = vxpose.xlu0.b32.cont [5/16] 0.0, 128
  %1089 = vxpose.xlu0.b32.cont [6/16] 0.0, 128
  %1090 = vxpose.xlu0.b32.cont [7/16] 0.0, 128
  %1091 = vxpose.xlu0.b32.cont [8/16] 0.0, 128
  %1092 = vxpose.xlu0.b32.cont [9/16] 0.0, 128
  %1093 = vxpose.xlu0.b32.cont [10/16] 0.0, 128
  %1094 = vxpose.xlu0.b32.cont [11/16] 0.0, 128
  %1095 = vxpose.xlu0.b32.cont [12/16] 0.0, 128
  %1096 = vxpose.xlu0.b32.cont [13/16] 0.0, 128
  %1097 = vxpose.xlu0.b32.cont [14/16] 0.0, 128
  %1098 = vxpose.xlu0.b32.cont [15/16] 0.0, 128
  %1099 = vxpose.xlu0.b32.end [16/16] 0.0, 128
  %v1100 = vpop.trf.xlu0
  %v1101 = vpop.trf.xlu0
  %v1102 = vpop.trf.xlu0
  %v1103 = vpop.trf.xlu0
  %v1104 = vpop.trf.xlu0
  %v1105 = vpop.trf.xlu0
  %v1106 = vpop.trf.xlu0
  %v1107 = vpop.trf.xlu0
  %v1108 = vpop.trf.xlu0
  %v1109 = vpop.trf.xlu0
  %v1110 = vpop.trf.xlu0
  %v1111 = vpop.trf.xlu0
  %v1112 = vpop.trf.xlu0
  %v1113 = vpop.trf.xlu0
  %v1114 = vpop.trf.xlu0
  %v1115 = vpop.trf.xlu0
  %vm1116 = vcmask 105472
  %1117 = vst.msk [vmem:[%s4] sm:$0xff] %vm1116, %v1100
  %1118 = vst.msk [vmem:[%s4 + $0x8] sm:$0xff] %vm1116, %v1101
  %1119 = vst.msk [vmem:[%s4 + $0x10] sm:$0xff] %vm1116, %v1102
  %1120 = vst.msk [vmem:[%s4 + $0x18] sm:$0xff] %vm1116, %v1103
  %vm1124 = vcmask 1042432
  %v1125 = vrot.slane %v1081, 5
  %v1126 = vrot.slane %v1082, 5
  %v1127 = vsel %vm1124, %v1125, %v1126
  %v1128 = vrot.slane %v1083, 5
  %v1129 = vsel %vm1124, %v1126, %v1128
  %1132 = vxpose.xlu0.b32.start [1/16] %v1127, 128
  %1133 = vxpose.xlu0.b32.cont [2/16] %v1129, 128
  %1134 = vxpose.xlu0.b32.cont [3/16] 0.0, 128
  %1135 = vxpose.xlu0.b32.cont [4/16] 0.0, 128
  %1136 = vxpose.xlu0.b32.cont [5/16] 0.0, 128
  %1137 = vxpose.xlu0.b32.cont [6/16] 0.0, 128
  %1138 = vxpose.xlu0.b32.cont [7/16] 0.0, 128
  %1139 = vxpose.xlu0.b32.cont [8/16] 0.0, 128
  %1140 = vxpose.xlu0.b32.cont [9/16] 0.0, 128
  %1141 = vxpose.xlu0.b32.cont [10/16] 0.0, 128
  %1142 = vxpose.xlu0.b32.cont [11/16] 0.0, 128
  %1143 = vxpose.xlu0.b32.cont [12/16] 0.0, 128
  %1144 = vxpose.xlu0.b32.cont [13/16] 0.0, 128
  %1145 = vxpose.xlu0.b32.cont [14/16] 0.0, 128
  %1146 = vxpose.xlu0.b32.cont [15/16] 0.0, 128
  %1147 = vxpose.xlu0.b32.end [16/16] 0.0, 128
  %v1148 = vpop.trf.xlu0
  %v1149 = vpop.trf.xlu0
  %v1150 = vpop.trf.xlu0
  %v1151 = vpop.trf.xlu0
  %v1152 = vpop.trf.xlu0
  %v1153 = vpop.trf.xlu0
  %v1154 = vpop.trf.xlu0
  %v1155 = vpop.trf.xlu0
  %v1156 = vpop.trf.xlu0
  %v1157 = vpop.trf.xlu0
  %v1158 = vpop.trf.xlu0
  %v1159 = vpop.trf.xlu0
  %v1160 = vpop.trf.xlu0
  %v1161 = vpop.trf.xlu0
  %v1162 = vpop.trf.xlu0
  %v1163 = vpop.trf.xlu0
  %s1164 = scalar_lea.vmem %s4, 32
  %1165 = vst.msk [vmem:[%s1164] sm:$0xff] %vm1116, %v1148
  %1166 = vst.msk [vmem:[%s1164 + $0x8] sm:$0xff] %vm1116, %v1149
  %1167 = vst.msk [vmem:[%s1164 + $0x10] sm:$0xff] %vm1116, %v1150
  %1168 = vst.msk [vmem:[%s1164 + $0x18] sm:$0xff] %vm1116, %v1151
  // Predicated region
  $region18: #{tpu_custom_call.1} parent=0 // pred_check
    _
  $region19: #{tpu_custom_call.1} parent=0 // pred_check_branch
    %1170 = sbr.rel (0) target = $region21
  $region20: #{tpu_custom_call.1} parent=0 // pred_region
    _
  $region21: #{tpu_custom_call.1} parent=0 // pred_fallthru
    _
  // Predicated region
  $region22: #{tpu_custom_call.1} parent=0 // pred_check
    _
  $region23: #{tpu_custom_call.1} parent=0 // pred_check_branch
    %1172 = sbr.rel (0) target = $region25
  $region24: #{tpu_custom_call.1} parent=0 // pred_region
    _
  $region25: #{tpu_custom_call.1} parent=0 // pred_fallthru
    _

</llo_original>
